<compile_context>
chip_gen: v6e
topology: v6e:2x2x1
jax: 0.10.0
libtpu: 0.0.40
codegen_flags: <defaults>
</compile_context>

<pallas_src>
import jax
import jax.numpy as jnp
from jax import lax
from jax.experimental import pallas as pl
from jax.experimental.pallas import tpu as pltpu

B_BLOCK = 128          # batch-on-lanes: one full lane tile per gate row
MXU_DTYPE = jnp.float32  # flip to jnp.bfloat16 on v6e/v7x (loosen self-test tol to ~1e-2)


def temporal_encoder_kernel(x_ref,       # (T, I, BB)  time-major, batch on lanes
                            w_ih_ref,    # (3H, I)     PyTorch weight_ih_l0 (gate order r,z,n)
                            w_hh_ref,    # (3H, H)     PyTorch weight_hh_l0
                            w_head_ref,  # (2H, H)     [fc_mu.weight ; fc_logvar.weight]
                            b_ref,       # (6H, 1)     [b_r+b_hr, b_z+b_hz, b_in, b_hn, b_mu, b_logvar]
                            out_ref):    # (2H, BB)    [mu ; logvar], batch on lanes
    T, I, B = x_ref.shape
    H = w_hh_ref.shape[1]
    f32 = jnp.float32

    w_ih = w_ih_ref[...]
    w_hh = w_hh_ref[...]

    # Lane-broadcast the packed biases once (hoisted out of the time loop).
    b_gates = jnp.broadcast_to(b_ref[0:3 * H, :], (3 * H, B))     # r/z folded + input-side n
    b_hn = jnp.broadcast_to(b_ref[3 * H:4 * H, :], (H, B))        # hidden-side n bias
    b_head = jnp.broadcast_to(b_ref[4 * H:6 * H, :], (2 * H, B))  # [b_mu ; b_logvar]

    h = jnp.zeros((H, B), f32)
    # Static full unroll (T is small & static); all slices below are static and
    # sublane-tile aligned (multiples of 8).
    # TODO(synk): for large T or larger B_BLOCK, switch to lax.fori_loop(unroll=True)
    # over per-step a_t held in VMEM scratch (pl.ds + pl.multiple_of) to bound live ranges.
    for t in range(T):
        # Input projection: one fused (3H,I)@(I,B) MXU push, independent of h, so the
        # scheduler overlaps it with the serial chain. Biases folded in.
        a = jnp.dot(w_ih, x_ref[t], preferred_element_type=f32) + b_gates      # (3H, B)
        # Hidden projection: the ONLY op on the serial critical path - one fused push.
        g = jnp.dot(w_hh, h.astype(w_hh.dtype), preferred_element_type=f32)    # (3H, B)
        r = jax.nn.sigmoid(a[0:H] + g[0:H])
        z = jax.nn.sigmoid(a[H:2 * H] + g[H:2 * H])
        n = jnp.tanh(a[2 * H:3 * H] + r * (g[2 * H:3 * H] + b_hn))
        h = (1.0 - z) * n + z * h

    # Fused mu/logvar head: one MXU push, one lane-dense (2H, 128) store.
    out_ref[...] = (jnp.dot(w_head_ref[...], h.astype(w_head_ref.dtype),
                            preferred_element_type=f32) + b_head)


def pack_params(params, mxu_dtype=MXU_DTYPE):
    """One-time packing of GRU + head parameters (keep this out of the per-call hot path)."""
    H = params["b_mu"].shape[0]
    w_ih = params["w_ih"].astype(mxu_dtype)                         # (3H, I)
    w_hh = params["w_hh"].astype(mxu_dtype)                         # (3H, H)
    w_head = jnp.concatenate([params["w_mu"], params["w_logvar"]],
                             axis=0).astype(mxu_dtype)              # (2H, H)
    b_ih = params["b_ih"].astype(jnp.float32)
    b_hh = params["b_hh"].astype(jnp.float32)
    b_all = jnp.concatenate([
        b_ih[0:2 * H] + b_hh[0:2 * H],        # r, z: input+hidden biases folded
        b_ih[2 * H:3 * H],                    # n: input-side bias
        b_hh[2 * H:3 * H],                    # n: hidden-side bias (inside r * (...))
        params["b_mu"].astype(jnp.float32),
        params["b_logvar"].astype(jnp.float32),
    ])[:, None]                                                      # (6H, 1)
    return {"w_ih": w_ih, "w_hh": w_hh, "w_head": w_head, "b": b_all, "H": H}


def temporal_encoder(latent_A_seq, packed):
    """latent_A_seq: (B, T, I) float32 (batch_first) -> (mu, logvar), each (B, H)."""
    B, T, I = latent_A_seq.shape
    H = packed["H"]

    # Batch-on-lanes layout: (B, T, I) -> (T, I, B_pad); padded batch columns produce
    # garbage that is sliced away below.
    # TODO(synk): accept time-major (T, I, B) input from the caller to avoid this per-call pass.
    B_pad = pl.cdiv(B, B_BLOCK) * B_BLOCK
    x = jnp.transpose(latent_A_seq.astype(packed["w_ih"].dtype), (1, 2, 0))   # (T, I, B)
    if B_pad != B:
        x = jnp.pad(x, ((0, 0), (0, 0), (0, B_pad - B)))

    def full(shape):
        return pl.BlockSpec(shape, lambda b, _n=len(shape): (0,) * _n)

    # NOTE: weight BlockSpecs are constant-index; at larger H/I consider
    # pipeline_mode=pl.Buffered(1) for them and an explicit vmem_limit_bytes
    # (v7x scoped default is 32 MiB of 64 MiB). Irrelevant at these sizes.
    out = pl.pallas_call(
        temporal_encoder_kernel,
        out_shape=jax.ShapeDtypeStruct((2 * H, B_pad), jnp.float32),
        grid=(B_pad // B_BLOCK,),
        in_specs=[
            pl.BlockSpec((T, I, B_BLOCK), lambda b: (0, 0, b)),
            full((3 * H, I)),
            full((3 * H, H)),
            full((2 * H, H)),
            full((6 * H, 1)),
        ],
        out_specs=pl.BlockSpec((2 * H, B_BLOCK), lambda b: (0, b)),
        compiler_params=pltpu.CompilerParams(
            dimension_semantics=("parallel",)),   # >= 2 batch blocks -> both v7x TCs
    )(x, packed["w_ih"], packed["w_hh"], packed["w_head"], packed["b"])

    mu = out[0:H, :B].T
    logvar = out[H:2 * H, :B].T
    return mu, logvar


def init_params(key, input_size, latent_dim_B):
    """Deterministic synthetic parameters matching nn.GRU / nn.Linear shapes."""
    H = latent_dim_B
    k = 1.0 / jnp.sqrt(jnp.float32(H))
    keys = jax.random.split(key, 8)
    u = lambda kk, shape: jax.random.uniform(kk, shape, jnp.float32, -k, k)
    return {
        "w_ih": u(keys[0], (3 * H, input_size)),   # weight_ih_l0
        "w_hh": u(keys[1], (3 * H, H)),            # weight_hh_l0
        "b_ih": u(keys[2], (3 * H,)),              # bias_ih_l0
        "b_hh": u(keys[3], (3 * H,)),              # bias_hh_l0
        "w_mu": u(keys[4], (H, H)),                # fc_mu.weight
        "b_mu": u(keys[5], (H,)),                  # fc_mu.bias
        "w_logvar": u(keys[6], (H, H)),            # fc_logvar.weight
        "b_logvar": u(keys[7], (H,)),              # fc_logvar.bias
    }


def reference_forward(x, params):
    """Pure-JAX reference of the PyTorch forward (for verification)."""
    B, T, I = x.shape
    H = params["b_mu"].shape[0]
    wih, whh = params["w_ih"], params["w_hh"]
    bih, bhh = params["b_ih"], params["b_hh"]

    def step(h, x_t):
        gi = x_t @ wih.T + bih
        gh = h @ whh.T + bhh
        r = jax.nn.sigmoid(gi[:, 0:H] + gh[:, 0:H])
        z = jax.nn.sigmoid(gi[:, H:2 * H] + gh[:, H:2 * H])
        n = jnp.tanh(gi[:, 2 * H:3 * H] + r * gh[:, 2 * H:3 * H])
        h_new = (1.0 - z) * n + z * h
        return h_new, None

    h0 = jnp.zeros((B, H), jnp.float32)
    h_n, _ = lax.scan(step, h0, jnp.transpose(x, (1, 0, 2)))
    mu = h_n @ params["w_mu"].T + params["b_mu"]
    logvar = h_n @ params["w_logvar"].T + params["b_logvar"]
    return mu, logvar


if __name__ == "__main__":
    batch, seq, input_size, latent_dim_B = 2, 8, 64, 8

    key = jax.random.PRNGKey(0)
    k_x, k_p = jax.random.split(key)
    x = jax.random.normal(k_x, (batch, seq, input_size), jnp.float32)
    params = init_params(k_p, input_size, latent_dim_B)

    packed = pack_params(params)          # one-time packing, out of the hot path
    mu, logvar = temporal_encoder(x, packed)
    jax.block_until_ready((mu, logvar))

    mu_ref, logvar_ref = reference_forward(x, params)
    assert mu.shape == (batch, latent_dim_B) and logvar.shape == (batch, latent_dim_B)
    assert jnp.allclose(mu, mu_ref, atol=1e-5, rtol=1e-5)
    assert jnp.allclose(logvar, logvar_ref, atol=1e-5, rtol=1e-5)

    print("KERNEL_OK")
</pallas_src>

<mosaic_0001>
module attributes {stable_mosaic.version = 11 : i64} {
  func.func @temporal_encoder_kernel(%arg0: i32, %arg1: memref<8x64x128xf32, #tpu.memory_space<vmem>>, %arg2: memref<24x64xf32, #tpu.memory_space<vmem>>, %arg3: memref<24x8xf32, #tpu.memory_space<vmem>>, %arg4: memref<16x8xf32, #tpu.memory_space<vmem>>, %arg5: memref<48x1xf32, #tpu.memory_space<vmem>>, %arg6: memref<16x128xf32, #tpu.memory_space<vmem>>) attributes {dimension_semantics = [#tpu.dimension_semantics<parallel>], iteration_bounds = array<i64: 1>, scalar_prefetch = 0 : i64, scratch_operands = 0 : i64, tpu.core_type = #tpu.core_type<tc>, window_params = [{transform_indices = @transform_0, window_bounds = array<i64: 8, 64, 128>}, {pipeline_mode = #tpu.pipeline_mode<synchronous>, transform_indices = @transform_1, window_bounds = array<i64: 24, 64>}, {pipeline_mode = #tpu.pipeline_mode<synchronous>, transform_indices = @transform_2, window_bounds = array<i64: 24, 8>}, {pipeline_mode = #tpu.pipeline_mode<synchronous>, transform_indices = @transform_3, window_bounds = array<i64: 16, 8>}, {pipeline_mode = #tpu.pipeline_mode<synchronous>, transform_indices = @transform_4, window_bounds = array<i64: 48, 1>}, {transform_indices = @transform_5, window_bounds = array<i64: 16, 128>}]} {
    %c0 = arith.constant 0 : index
    %c0_0 = arith.constant 0 : index
    %0 = vector.load %arg2[%c0, %c0_0] : memref<24x64xf32, #tpu.memory_space<vmem>>, vector<24x64xf32>
    %c0_1 = arith.constant 0 : index
    %c0_2 = arith.constant 0 : index
    %1 = vector.load %arg3[%c0_1, %c0_2] : memref<24x8xf32, #tpu.memory_space<vmem>>, vector<24x8xf32>
    %c0_3 = arith.constant 0 : index
    %c0_4 = arith.constant 0 : index
    %2 = vector.load %arg5[%c0_3, %c0_4] : memref<48x1xf32, #tpu.memory_space<vmem>>, vector<24x1xf32>
    %3 = vector.shape_cast %2 : vector<24x1xf32> to vector<24x1xf32>
    %4 = vector.broadcast %3 : vector<24x1xf32> to vector<24x128xf32>
    %c24 = arith.constant 24 : index
    %c0_5 = arith.constant 0 : index
    %5 = vector.load %arg5[%c24, %c0_5] : memref<48x1xf32, #tpu.memory_space<vmem>>, vector<8x1xf32>
    %6 = vector.shape_cast %5 : vector<8x1xf32> to vector<8x1xf32>
    %7 = vector.broadcast %6 : vector<8x1xf32> to vector<8x128xf32>
    %c32 = arith.constant 32 : index
    %c0_6 = arith.constant 0 : index
    %8 = vector.load %arg5[%c32, %c0_6] : memref<48x1xf32, #tpu.memory_space<vmem>>, vector<16x1xf32>
    %9 = vector.shape_cast %8 : vector<16x1xf32> to vector<16x1xf32>
    %10 = vector.broadcast %9 : vector<16x1xf32> to vector<16x128xf32>
    %cst = arith.constant 0.000000e+00 : f32
    %11 = vector.broadcast %cst : f32 to vector<8x128xf32>
    %c0_7 = arith.constant 0 : index
    %c0_8 = arith.constant 0 : index
    %c0_9 = arith.constant 0 : index
    %12 = vector.load %arg1[%c0_7, %c0_8, %c0_9] : memref<8x64x128xf32, #tpu.memory_space<vmem>>, vector<1x64x128xf32>
    %13 = vector.shape_cast %12 : vector<1x64x128xf32> to vector<64x128xf32>
    %cst_10 = arith.constant dense<0.000000e+00> : vector<24x128xf32>
    %14 = tpu.matmul %0, %13, %cst_10 {dimension_numbers = #tpu.dot_dimension_numbers<[1], [0], [0], [1], [0, 0, 1, 1], [], []>} : vector<24x64xf32>, vector<64x128xf32>, vector<24x128xf32> -> vector<24x128xf32>
    %15 = arith.addf %14, %4 : vector<24x128xf32>
    %cst_11 = arith.constant dense<0.000000e+00> : vector<24x128xf32>
    %16 = tpu.matmul %1, %11, %cst_11 {dimension_numbers = #tpu.dot_dimension_numbers<[1], [0], [0], [1], [0, 0, 1, 1], [], []>} : vector<24x8xf32>, vector<8x128xf32>, vector<24x128xf32> -> vector<24x128xf32>
    %17 = vector.extract_strided_slice %15 {offsets = [0, 0], sizes = [8, 128], strides = [1, 1]} : vector<24x128xf32> to vector<8x128xf32>
    %18 = vector.extract_strided_slice %16 {offsets = [0, 0], sizes = [8, 128], strides = [1, 1]} : vector<24x128xf32> to vector<8x128xf32>
    %19 = arith.addf %17, %18 : vector<8x128xf32>
    %20 = arith.negf %19 : vector<8x128xf32>
    %21 = math.exp %20 : vector<8x128xf32>
    %cst_12 = arith.constant 1.000000e+00 : f32
    %22 = vector.broadcast %cst_12 : f32 to vector<8x128xf32>
    %23 = arith.addf %22, %21 : vector<8x128xf32>
    %24 = arith.divf %22, %23 : vector<8x128xf32>
    %25 = vector.extract_strided_slice %15 {offsets = [8, 0], sizes = [8, 128], strides = [1, 1]} : vector<24x128xf32> to vector<8x128xf32>
    %26 = vector.extract_strided_slice %16 {offsets = [8, 0], sizes = [8, 128], strides = [1, 1]} : vector<24x128xf32> to vector<8x128xf32>
    %27 = arith.addf %25, %26 : vector<8x128xf32>
    %28 = arith.negf %27 : vector<8x128xf32>
    %29 = math.exp %28 : vector<8x128xf32>
    %cst_13 = arith.constant 1.000000e+00 : f32
    %30 = vector.broadcast %cst_13 : f32 to vector<8x128xf32>
    %31 = arith.addf %30, %29 : vector<8x128xf32>
    %32 = arith.divf %30, %31 : vector<8x128xf32>
    %33 = vector.extract_strided_slice %15 {offsets = [16, 0], sizes = [8, 128], strides = [1, 1]} : vector<24x128xf32> to vector<8x128xf32>
    %34 = vector.extract_strided_slice %16 {offsets = [16, 0], sizes = [8, 128], strides = [1, 1]} : vector<24x128xf32> to vector<8x128xf32>
    %35 = arith.addf %34, %7 : vector<8x128xf32>
    %36 = arith.mulf %24, %35 : vector<8x128xf32>
    %37 = arith.addf %33, %36 : vector<8x128xf32>
    %38 = math.tanh %37 : vector<8x128xf32>
    %cst_14 = arith.constant 1.000000e+00 : f32
    %39 = vector.broadcast %cst_14 : f32 to vector<8x128xf32>
    %40 = arith.subf %39, %32 : vector<8x128xf32>
    %41 = arith.mulf %40, %38 : vector<8x128xf32>
    %42 = arith.mulf %32, %11 : vector<8x128xf32>
    %43 = arith.addf %41, %42 : vector<8x128xf32>
    %c1 = arith.constant 1 : index
    %c0_15 = arith.constant 0 : index
    %c0_16 = arith.constant 0 : index
    %44 = vector.load %arg1[%c1, %c0_15, %c0_16] : memref<8x64x128xf32, #tpu.memory_space<vmem>>, vector<1x64x128xf32>
    %45 = vector.shape_cast %44 : vector<1x64x128xf32> to vector<64x128xf32>
    %cst_17 = arith.constant dense<0.000000e+00> : vector<24x128xf32>
    %46 = tpu.matmul %0, %45, %cst_17 {dimension_numbers = #tpu.dot_dimension_numbers<[1], [0], [0], [1], [0, 0, 1, 1], [], []>} : vector<24x64xf32>, vector<64x128xf32>, vector<24x128xf32> -> vector<24x128xf32>
    %47 = arith.addf %46, %4 : vector<24x128xf32>
    %cst_18 = arith.constant dense<0.000000e+00> : vector<24x128xf32>
    %48 = tpu.matmul %1, %43, %cst_18 {dimension_numbers = #tpu.dot_dimension_numbers<[1], [0], [0], [1], [0, 0, 1, 1], [], []>} : vector<24x8xf32>, vector<8x128xf32>, vector<24x128xf32> -> vector<24x128xf32>
    %49 = vector.extract_strided_slice %47 {offsets = [0, 0], sizes = [8, 128], strides = [1, 1]} : vector<24x128xf32> to vector<8x128xf32>
    %50 = vector.extract_strided_slice %48 {offsets = [0, 0], sizes = [8, 128], strides = [1, 1]} : vector<24x128xf32> to vector<8x128xf32>
    %51 = arith.addf %49, %50 : vector<8x128xf32>
    %52 = arith.negf %51 : vector<8x128xf32>
    %53 = math.exp %52 : vector<8x128xf32>
    %cst_19 = arith.constant 1.000000e+00 : f32
    %54 = vector.broadcast %cst_19 : f32 to vector<8x128xf32>
    %55 = arith.addf %54, %53 : vector<8x128xf32>
    %56 = arith.divf %54, %55 : vector<8x128xf32>
    %57 = vector.extract_strided_slice %47 {offsets = [8, 0], sizes = [8, 128], strides = [1, 1]} : vector<24x128xf32> to vector<8x128xf32>
    %58 = vector.extract_strided_slice %48 {offsets = [8, 0], sizes = [8, 128], strides = [1, 1]} : vector<24x128xf32> to vector<8x128xf32>
    %59 = arith.addf %57, %58 : vector<8x128xf32>
    %60 = arith.negf %59 : vector<8x128xf32>
    %61 = math.exp %60 : vector<8x128xf32>
    %cst_20 = arith.constant 1.000000e+00 : f32
    %62 = vector.broadcast %cst_20 : f32 to vector<8x128xf32>
    %63 = arith.addf %62, %61 : vector<8x128xf32>
    %64 = arith.divf %62, %63 : vector<8x128xf32>
    %65 = vector.extract_strided_slice %47 {offsets = [16, 0], sizes = [8, 128], strides = [1, 1]} : vector<24x128xf32> to vector<8x128xf32>
    %66 = vector.extract_strided_slice %48 {offsets = [16, 0], sizes = [8, 128], strides = [1, 1]} : vector<24x128xf32> to vector<8x128xf32>
    %67 = arith.addf %66, %7 : vector<8x128xf32>
    %68 = arith.mulf %56, %67 : vector<8x128xf32>
    %69 = arith.addf %65, %68 : vector<8x128xf32>
    %70 = math.tanh %69 : vector<8x128xf32>
    %cst_21 = arith.constant 1.000000e+00 : f32
    %71 = vector.broadcast %cst_21 : f32 to vector<8x128xf32>
    %72 = arith.subf %71, %64 : vector<8x128xf32>
    %73 = arith.mulf %72, %70 : vector<8x128xf32>
    %74 = arith.mulf %64, %43 : vector<8x128xf32>
    %75 = arith.addf %73, %74 : vector<8x128xf32>
    %c2 = arith.constant 2 : index
    %c0_22 = arith.constant 0 : index
    %c0_23 = arith.constant 0 : index
    %76 = vector.load %arg1[%c2, %c0_22, %c0_23] : memref<8x64x128xf32, #tpu.memory_space<vmem>>, vector<1x64x128xf32>
    %77 = vector.shape_cast %76 : vector<1x64x128xf32> to vector<64x128xf32>
    %cst_24 = arith.constant dense<0.000000e+00> : vector<24x128xf32>
    %78 = tpu.matmul %0, %77, %cst_24 {dimension_numbers = #tpu.dot_dimension_numbers<[1], [0], [0], [1], [0, 0, 1, 1], [], []>} : vector<24x64xf32>, vector<64x128xf32>, vector<24x128xf32> -> vector<24x128xf32>
    %79 = arith.addf %78, %4 : vector<24x128xf32>
    %cst_25 = arith.constant dense<0.000000e+00> : vector<24x128xf32>
    %80 = tpu.matmul %1, %75, %cst_25 {dimension_numbers = #tpu.dot_dimension_numbers<[1], [0], [0], [1], [0, 0, 1, 1], [], []>} : vector<24x8xf32>, vector<8x128xf32>, vector<24x128xf32> -> vector<24x128xf32>
    %81 = vector.extract_strided_slice %79 {offsets = [0, 0], sizes = [8, 128], strides = [1, 1]} : vector<24x128xf32> to vector<8x128xf32>
    %82 = vector.extract_strided_slice %80 {offsets = [0, 0], sizes = [8, 128], strides = [1, 1]} : vector<24x128xf32> to vector<8x128xf32>
    %83 = arith.addf %81, %82 : vector<8x128xf32>
    %84 = arith.negf %83 : vector<8x128xf32>
    %85 = math.exp %84 : vector<8x128xf32>
    %cst_26 = arith.constant 1.000000e+00 : f32
    %86 = vector.broadcast %cst_26 : f32 to vector<8x128xf32>
    %87 = arith.addf %86, %85 : vector<8x128xf32>
    %88 = arith.divf %86, %87 : vector<8x128xf32>
    %89 = vector.extract_strided_slice %79 {offsets = [8, 0], sizes = [8, 128], strides = [1, 1]} : vector<24x128xf32> to vector<8x128xf32>
    %90 = vector.extract_strided_slice %80 {offsets = [8, 0], sizes = [8, 128], strides = [1, 1]} : vector<24x128xf32> to vector<8x128xf32>
    %91 = arith.addf %89, %90 : vector<8x128xf32>
    %92 = arith.negf %91 : vector<8x128xf32>
    %93 = math.exp %92 : vector<8x128xf32>
    %cst_27 = arith.constant 1.000000e+00 : f32
    %94 = vector.broadcast %cst_27 : f32 to vector<8x128xf32>
    %95 = arith.addf %94, %93 : vector<8x128xf32>
    %96 = arith.divf %94, %95 : vector<8x128xf32>
    %97 = vector.extract_strided_slice %79 {offsets = [16, 0], sizes = [8, 128], strides = [1, 1]} : vector<24x128xf32> to vector<8x128xf32>
    %98 = vector.extract_strided_slice %80 {offsets = [16, 0], sizes = [8, 128], strides = [1, 1]} : vector<24x128xf32> to vector<8x128xf32>
    %99 = arith.addf %98, %7 : vector<8x128xf32>
    %100 = arith.mulf %88, %99 : vector<8x128xf32>
    %101 = arith.addf %97, %100 : vector<8x128xf32>
    %102 = math.tanh %101 : vector<8x128xf32>
    %cst_28 = arith.constant 1.000000e+00 : f32
    %103 = vector.broadcast %cst_28 : f32 to vector<8x128xf32>
    %104 = arith.subf %103, %96 : vector<8x128xf32>
    %105 = arith.mulf %104, %102 : vector<8x128xf32>
    %106 = arith.mulf %96, %75 : vector<8x128xf32>
    %107 = arith.addf %105, %106 : vector<8x128xf32>
    %c3 = arith.constant 3 : index
    %c0_29 = arith.constant 0 : index
    %c0_30 = arith.constant 0 : index
    %108 = vector.load %arg1[%c3, %c0_29, %c0_30] : memref<8x64x128xf32, #tpu.memory_space<vmem>>, vector<1x64x128xf32>
    %109 = vector.shape_cast %108 : vector<1x64x128xf32> to vector<64x128xf32>
    %cst_31 = arith.constant dense<0.000000e+00> : vector<24x128xf32>
    %110 = tpu.matmul %0, %109, %cst_31 {dimension_numbers = #tpu.dot_dimension_numbers<[1], [0], [0], [1], [0, 0, 1, 1], [], []>} : vector<24x64xf32>, vector<64x128xf32>, vector<24x128xf32> -> vector<24x128xf32>
    %111 = arith.addf %110, %4 : vector<24x128xf32>
    %cst_32 = arith.constant dense<0.000000e+00> : vector<24x128xf32>
    %112 = tpu.matmul %1, %107, %cst_32 {dimension_numbers = #tpu.dot_dimension_numbers<[1], [0], [0], [1], [0, 0, 1, 1], [], []>} : vector<24x8xf32>, vector<8x128xf32>, vector<24x128xf32> -> vector<24x128xf32>
    %113 = vector.extract_strided_slice %111 {offsets = [0, 0], sizes = [8, 128], strides = [1, 1]} : vector<24x128xf32> to vector<8x128xf32>
    %114 = vector.extract_strided_slice %112 {offsets = [0, 0], sizes = [8, 128], strides = [1, 1]} : vector<24x128xf32> to vector<8x128xf32>
    %115 = arith.addf %113, %114 : vector<8x128xf32>
    %116 = arith.negf %115 : vector<8x128xf32>
    %117 = math.exp %116 : vector<8x128xf32>
    %cst_33 = arith.constant 1.000000e+00 : f32
    %118 = vector.broadcast %cst_33 : f32 to vector<8x128xf32>
    %119 = arith.addf %118, %117 : vector<8x128xf32>
    %120 = arith.divf %118, %119 : vector<8x128xf32>
    %121 = vector.extract_strided_slice %111 {offsets = [8, 0], sizes = [8, 128], strides = [1, 1]} : vector<24x128xf32> to vector<8x128xf32>
    %122 = vector.extract_strided_slice %112 {offsets = [8, 0], sizes = [8, 128], strides = [1, 1]} : vector<24x128xf32> to vector<8x128xf32>
    %123 = arith.addf %121, %122 : vector<8x128xf32>
    %124 = arith.negf %123 : vector<8x128xf32>
    %125 = math.exp %124 : vector<8x128xf32>
    %cst_34 = arith.constant 1.000000e+00 : f32
    %126 = vector.broadcast %cst_34 : f32 to vector<8x128xf32>
    %127 = arith.addf %126, %125 : vector<8x128xf32>
    %128 = arith.divf %126, %127 : vector<8x128xf32>
    %129 = vector.extract_strided_slice %111 {offsets = [16, 0], sizes = [8, 128], strides = [1, 1]} : vector<24x128xf32> to vector<8x128xf32>
    %130 = vector.extract_strided_slice %112 {offsets = [16, 0], sizes = [8, 128], strides = [1, 1]} : vector<24x128xf32> to vector<8x128xf32>
    %131 = arith.addf %130, %7 : vector<8x128xf32>
    %132 = arith.mulf %120, %131 : vector<8x128xf32>
    %133 = arith.addf %129, %132 : vector<8x128xf32>
    %134 = math.tanh %133 : vector<8x128xf32>
    %cst_35 = arith.constant 1.000000e+00 : f32
    %135 = vector.broadcast %cst_35 : f32 to vector<8x128xf32>
    %136 = arith.subf %135, %128 : vector<8x128xf32>
    %137 = arith.mulf %136, %134 : vector<8x128xf32>
    %138 = arith.mulf %128, %107 : vector<8x128xf32>
    %139 = arith.addf %137, %138 : vector<8x128xf32>
    %c4 = arith.constant 4 : index
    %c0_36 = arith.constant 0 : index
    %c0_37 = arith.constant 0 : index
    %140 = vector.load %arg1[%c4, %c0_36, %c0_37] : memref<8x64x128xf32, #tpu.memory_space<vmem>>, vector<1x64x128xf32>
    %141 = vector.shape_cast %140 : vector<1x64x128xf32> to vector<64x128xf32>
    %cst_38 = arith.constant dense<0.000000e+00> : vector<24x128xf32>
    %142 = tpu.matmul %0, %141, %cst_38 {dimension_numbers = #tpu.dot_dimension_numbers<[1], [0], [0], [1], [0, 0, 1, 1], [], []>} : vector<24x64xf32>, vector<64x128xf32>, vector<24x128xf32> -> vector<24x128xf32>
    %143 = arith.addf %142, %4 : vector<24x128xf32>
    %cst_39 = arith.constant dense<0.000000e+00> : vector<24x128xf32>
    %144 = tpu.matmul %1, %139, %cst_39 {dimension_numbers = #tpu.dot_dimension_numbers<[1], [0], [0], [1], [0, 0, 1, 1], [], []>} : vector<24x8xf32>, vector<8x128xf32>, vector<24x128xf32> -> vector<24x128xf32>
    %145 = vector.extract_strided_slice %143 {offsets = [0, 0], sizes = [8, 128], strides = [1, 1]} : vector<24x128xf32> to vector<8x128xf32>
    %146 = vector.extract_strided_slice %144 {offsets = [0, 0], sizes = [8, 128], strides = [1, 1]} : vector<24x128xf32> to vector<8x128xf32>
    %147 = arith.addf %145, %146 : vector<8x128xf32>
    %148 = arith.negf %147 : vector<8x128xf32>
    %149 = math.exp %148 : vector<8x128xf32>
    %cst_40 = arith.constant 1.000000e+00 : f32
    %150 = vector.broadcast %cst_40 : f32 to vector<8x128xf32>
    %151 = arith.addf %150, %149 : vector<8x128xf32>
    %152 = arith.divf %150, %151 : vector<8x128xf32>
    %153 = vector.extract_strided_slice %143 {offsets = [8, 0], sizes = [8, 128], strides = [1, 1]} : vector<24x128xf32> to vector<8x128xf32>
    %154 = vector.extract_strided_slice %144 {offsets = [8, 0], sizes = [8, 128], strides = [1, 1]} : vector<24x128xf32> to vector<8x128xf32>
    %155 = arith.addf %153, %154 : vector<8x128xf32>
    %156 = arith.negf %155 : vector<8x128xf32>
    %157 = math.exp %156 : vector<8x128xf32>
    %cst_41 = arith.constant 1.000000e+00 : f32
    %158 = vector.broadcast %cst_41 : f32 to vector<8x128xf32>
    %159 = arith.addf %158, %157 : vector<8x128xf32>
    %160 = arith.divf %158, %159 : vector<8x128xf32>
    %161 = vector.extract_strided_slice %143 {offsets = [16, 0], sizes = [8, 128], strides = [1, 1]} : vector<24x128xf32> to vector<8x128xf32>
    %162 = vector.extract_strided_slice %144 {offsets = [16, 0], sizes = [8, 128], strides = [1, 1]} : vector<24x128xf32> to vector<8x128xf32>
    %163 = arith.addf %162, %7 : vector<8x128xf32>
    %164 = arith.mulf %152, %163 : vector<8x128xf32>
    %165 = arith.addf %161, %164 : vector<8x128xf32>
    %166 = math.tanh %165 : vector<8x128xf32>
    %cst_42 = arith.constant 1.000000e+00 : f32
    %167 = vector.broadcast %cst_42 : f32 to vector<8x128xf32>
    %168 = arith.subf %167, %160 : vector<8x128xf32>
    %169 = arith.mulf %168, %166 : vector<8x128xf32>
    %170 = arith.mulf %160, %139 : vector<8x128xf32>
    %171 = arith.addf %169, %170 : vector<8x128xf32>
    %c5 = arith.constant 5 : index
    %c0_43 = arith.constant 0 : index
    %c0_44 = arith.constant 0 : index
    %172 = vector.load %arg1[%c5, %c0_43, %c0_44] : memref<8x64x128xf32, #tpu.memory_space<vmem>>, vector<1x64x128xf32>
    %173 = vector.shape_cast %172 : vector<1x64x128xf32> to vector<64x128xf32>
    %cst_45 = arith.constant dense<0.000000e+00> : vector<24x128xf32>
    %174 = tpu.matmul %0, %173, %cst_45 {dimension_numbers = #tpu.dot_dimension_numbers<[1], [0], [0], [1], [0, 0, 1, 1], [], []>} : vector<24x64xf32>, vector<64x128xf32>, vector<24x128xf32> -> vector<24x128xf32>
    %175 = arith.addf %174, %4 : vector<24x128xf32>
    %cst_46 = arith.constant dense<0.000000e+00> : vector<24x128xf32>
    %176 = tpu.matmul %1, %171, %cst_46 {dimension_numbers = #tpu.dot_dimension_numbers<[1], [0], [0], [1], [0, 0, 1, 1], [], []>} : vector<24x8xf32>, vector<8x128xf32>, vector<24x128xf32> -> vector<24x128xf32>
    %177 = vector.extract_strided_slice %175 {offsets = [0, 0], sizes = [8, 128], strides = [1, 1]} : vector<24x128xf32> to vector<8x128xf32>
    %178 = vector.extract_strided_slice %176 {offsets = [0, 0], sizes = [8, 128], strides = [1, 1]} : vector<24x128xf32> to vector<8x128xf32>
    %179 = arith.addf %177, %178 : vector<8x128xf32>
    %180 = arith.negf %179 : vector<8x128xf32>
    %181 = math.exp %180 : vector<8x128xf32>
    %cst_47 = arith.constant 1.000000e+00 : f32
    %182 = vector.broadcast %cst_47 : f32 to vector<8x128xf32>
    %183 = arith.addf %182, %181 : vector<8x128xf32>
    %184 = arith.divf %182, %183 : vector<8x128xf32>
    %185 = vector.extract_strided_slice %175 {offsets = [8, 0], sizes = [8, 128], strides = [1, 1]} : vector<24x128xf32> to vector<8x128xf32>
    %186 = vector.extract_strided_slice %176 {offsets = [8, 0], sizes = [8, 128], strides = [1, 1]} : vector<24x128xf32> to vector<8x128xf32>
    %187 = arith.addf %185, %186 : vector<8x128xf32>
    %188 = arith.negf %187 : vector<8x128xf32>
    %189 = math.exp %188 : vector<8x128xf32>
    %cst_48 = arith.constant 1.000000e+00 : f32
    %190 = vector.broadcast %cst_48 : f32 to vector<8x128xf32>
    %191 = arith.addf %190, %189 : vector<8x128xf32>
    %192 = arith.divf %190, %191 : vector<8x128xf32>
    %193 = vector.extract_strided_slice %175 {offsets = [16, 0], sizes = [8, 128], strides = [1, 1]} : vector<24x128xf32> to vector<8x128xf32>
    %194 = vector.extract_strided_slice %176 {offsets = [16, 0], sizes = [8, 128], strides = [1, 1]} : vector<24x128xf32> to vector<8x128xf32>
    %195 = arith.addf %194, %7 : vector<8x128xf32>
    %196 = arith.mulf %184, %195 : vector<8x128xf32>
    %197 = arith.addf %193, %196 : vector<8x128xf32>
    %198 = math.tanh %197 : vector<8x128xf32>
    %cst_49 = arith.constant 1.000000e+00 : f32
    %199 = vector.broadcast %cst_49 : f32 to vector<8x128xf32>
    %200 = arith.subf %199, %192 : vector<8x128xf32>
    %201 = arith.mulf %200, %198 : vector<8x128xf32>
    %202 = arith.mulf %192, %171 : vector<8x128xf32>
    %203 = arith.addf %201, %202 : vector<8x128xf32>
    %c6 = arith.constant 6 : index
    %c0_50 = arith.constant 0 : index
    %c0_51 = arith.constant 0 : index
    %204 = vector.load %arg1[%c6, %c0_50, %c0_51] : memref<8x64x128xf32, #tpu.memory_space<vmem>>, vector<1x64x128xf32>
    %205 = vector.shape_cast %204 : vector<1x64x128xf32> to vector<64x128xf32>
    %cst_52 = arith.constant dense<0.000000e+00> : vector<24x128xf32>
    %206 = tpu.matmul %0, %205, %cst_52 {dimension_numbers = #tpu.dot_dimension_numbers<[1], [0], [0], [1], [0, 0, 1, 1], [], []>} : vector<24x64xf32>, vector<64x128xf32>, vector<24x128xf32> -> vector<24x128xf32>
    %207 = arith.addf %206, %4 : vector<24x128xf32>
    %cst_53 = arith.constant dense<0.000000e+00> : vector<24x128xf32>
    %208 = tpu.matmul %1, %203, %cst_53 {dimension_numbers = #tpu.dot_dimension_numbers<[1], [0], [0], [1], [0, 0, 1, 1], [], []>} : vector<24x8xf32>, vector<8x128xf32>, vector<24x128xf32> -> vector<24x128xf32>
    %209 = vector.extract_strided_slice %207 {offsets = [0, 0], sizes = [8, 128], strides = [1, 1]} : vector<24x128xf32> to vector<8x128xf32>
    %210 = vector.extract_strided_slice %208 {offsets = [0, 0], sizes = [8, 128], strides = [1, 1]} : vector<24x128xf32> to vector<8x128xf32>
    %211 = arith.addf %209, %210 : vector<8x128xf32>
    %212 = arith.negf %211 : vector<8x128xf32>
    %213 = math.exp %212 : vector<8x128xf32>
    %cst_54 = arith.constant 1.000000e+00 : f32
    %214 = vector.broadcast %cst_54 : f32 to vector<8x128xf32>
    %215 = arith.addf %214, %213 : vector<8x128xf32>
    %216 = arith.divf %214, %215 : vector<8x128xf32>
    %217 = vector.extract_strided_slice %207 {offsets = [8, 0], sizes = [8, 128], strides = [1, 1]} : vector<24x128xf32> to vector<8x128xf32>
    %218 = vector.extract_strided_slice %208 {offsets = [8, 0], sizes = [8, 128], strides = [1, 1]} : vector<24x128xf32> to vector<8x128xf32>
    %219 = arith.addf %217, %218 : vector<8x128xf32>
    %220 = arith.negf %219 : vector<8x128xf32>
    %221 = math.exp %220 : vector<8x128xf32>
    %cst_55 = arith.constant 1.000000e+00 : f32
    %222 = vector.broadcast %cst_55 : f32 to vector<8x128xf32>
    %223 = arith.addf %222, %221 : vector<8x128xf32>
    %224 = arith.divf %222, %223 : vector<8x128xf32>
    %225 = vector.extract_strided_slice %207 {offsets = [16, 0], sizes = [8, 128], strides = [1, 1]} : vector<24x128xf32> to vector<8x128xf32>
    %226 = vector.extract_strided_slice %208 {offsets = [16, 0], sizes = [8, 128], strides = [1, 1]} : vector<24x128xf32> to vector<8x128xf32>
    %227 = arith.addf %226, %7 : vector<8x128xf32>
    %228 = arith.mulf %216, %227 : vector<8x128xf32>
    %229 = arith.addf %225, %228 : vector<8x128xf32>
    %230 = math.tanh %229 : vector<8x128xf32>
    %cst_56 = arith.constant 1.000000e+00 : f32
    %231 = vector.broadcast %cst_56 : f32 to vector<8x128xf32>
    %232 = arith.subf %231, %224 : vector<8x128xf32>
    %233 = arith.mulf %232, %230 : vector<8x128xf32>
    %234 = arith.mulf %224, %203 : vector<8x128xf32>
    %235 = arith.addf %233, %234 : vector<8x128xf32>
    %c7 = arith.constant 7 : index
    %c0_57 = arith.constant 0 : index
    %c0_58 = arith.constant 0 : index
    %236 = vector.load %arg1[%c7, %c0_57, %c0_58] : memref<8x64x128xf32, #tpu.memory_space<vmem>>, vector<1x64x128xf32>
    %237 = vector.shape_cast %236 : vector<1x64x128xf32> to vector<64x128xf32>
    %cst_59 = arith.constant dense<0.000000e+00> : vector<24x128xf32>
    %238 = tpu.matmul %0, %237, %cst_59 {dimension_numbers = #tpu.dot_dimension_numbers<[1], [0], [0], [1], [0, 0, 1, 1], [], []>} : vector<24x64xf32>, vector<64x128xf32>, vector<24x128xf32> -> vector<24x128xf32>
    %239 = arith.addf %238, %4 : vector<24x128xf32>
    %cst_60 = arith.constant dense<0.000000e+00> : vector<24x128xf32>
    %240 = tpu.matmul %1, %235, %cst_60 {dimension_numbers = #tpu.dot_dimension_numbers<[1], [0], [0], [1], [0, 0, 1, 1], [], []>} : vector<24x8xf32>, vector<8x128xf32>, vector<24x128xf32> -> vector<24x128xf32>
    %241 = vector.extract_strided_slice %239 {offsets = [0, 0], sizes = [8, 128], strides = [1, 1]} : vector<24x128xf32> to vector<8x128xf32>
    %242 = vector.extract_strided_slice %240 {offsets = [0, 0], sizes = [8, 128], strides = [1, 1]} : vector<24x128xf32> to vector<8x128xf32>
    %243 = arith.addf %241, %242 : vector<8x128xf32>
    %244 = arith.negf %243 : vector<8x128xf32>
    %245 = math.exp %244 : vector<8x128xf32>
    %cst_61 = arith.constant 1.000000e+00 : f32
    %246 = vector.broadcast %cst_61 : f32 to vector<8x128xf32>
    %247 = arith.addf %246, %245 : vector<8x128xf32>
    %248 = arith.divf %246, %247 : vector<8x128xf32>
    %249 = vector.extract_strided_slice %239 {offsets = [8, 0], sizes = [8, 128], strides = [1, 1]} : vector<24x128xf32> to vector<8x128xf32>
    %250 = vector.extract_strided_slice %240 {offsets = [8, 0], sizes = [8, 128], strides = [1, 1]} : vector<24x128xf32> to vector<8x128xf32>
    %251 = arith.addf %249, %250 : vector<8x128xf32>
    %252 = arith.negf %251 : vector<8x128xf32>
    %253 = math.exp %252 : vector<8x128xf32>
    %cst_62 = arith.constant 1.000000e+00 : f32
    %254 = vector.broadcast %cst_62 : f32 to vector<8x128xf32>
    %255 = arith.addf %254, %253 : vector<8x128xf32>
    %256 = arith.divf %254, %255 : vector<8x128xf32>
    %257 = vector.extract_strided_slice %239 {offsets = [16, 0], sizes = [8, 128], strides = [1, 1]} : vector<24x128xf32> to vector<8x128xf32>
    %258 = vector.extract_strided_slice %240 {offsets = [16, 0], sizes = [8, 128], strides = [1, 1]} : vector<24x128xf32> to vector<8x128xf32>
    %259 = arith.addf %258, %7 : vector<8x128xf32>
    %260 = arith.mulf %248, %259 : vector<8x128xf32>
    %261 = arith.addf %257, %260 : vector<8x128xf32>
    %262 = math.tanh %261 : vector<8x128xf32>
    %cst_63 = arith.constant 1.000000e+00 : f32
    %263 = vector.broadcast %cst_63 : f32 to vector<8x128xf32>
    %264 = arith.subf %263, %256 : vector<8x128xf32>
    %265 = arith.mulf %264, %262 : vector<8x128xf32>
    %266 = arith.mulf %256, %235 : vector<8x128xf32>
    %267 = arith.addf %265, %266 : vector<8x128xf32>
    %c0_64 = arith.constant 0 : index
    %c0_65 = arith.constant 0 : index
    %268 = vector.load %arg4[%c0_64, %c0_65] : memref<16x8xf32, #tpu.memory_space<vmem>>, vector<16x8xf32>
    %cst_66 = arith.constant dense<0.000000e+00> : vector<16x128xf32>
    %269 = tpu.matmul %268, %267, %cst_66 {dimension_numbers = #tpu.dot_dimension_numbers<[1], [0], [0], [1], [0, 0, 1, 1], [], []>} : vector<16x8xf32>, vector<8x128xf32>, vector<16x128xf32> -> vector<16x128xf32>
    %270 = arith.addf %269, %10 : vector<16x128xf32>
    %c0_67 = arith.constant 0 : index
    %c0_68 = arith.constant 0 : index
    %271 = vector.load %arg6[%c0_67, %c0_68] : memref<16x128xf32, #tpu.memory_space<vmem>>, vector<16x128xf32>
    tpu.vector_store %arg6[%c0_67, %c0_68], %270 {strides = array<i32>} : memref<16x128xf32, #tpu.memory_space<vmem>>, vector<16x128xf32>,
    return
  }
  func.func @transform_0(%arg0: i32) -> (i32, i32, i32) {
    %c0_i32 = arith.constant 0 : i32
    %c0_i32_0 = arith.constant 0 : i32
    %c0_i32_1 = arith.constant 0 : i32
    return %c0_i32, %c0_i32_0, %arg0 : i32, i32, i32
  }
  func.func @transform_1(%arg0: i32) -> (i32, i32) {
    %c0_i32 = arith.constant 0 : i32
    %c0_i32_0 = arith.constant 0 : i32
    %c0_i32_1 = arith.constant 0 : i32
    return %c0_i32, %c0_i32_0 : i32, i32
  }
  func.func @transform_2(%arg0: i32) -> (i32, i32) {
    %c0_i32 = arith.constant 0 : i32
    %c0_i32_0 = arith.constant 0 : i32
    %c0_i32_1 = arith.constant 0 : i32
    return %c0_i32, %c0_i32_0 : i32, i32
  }
  func.func @transform_3(%arg0: i32) -> (i32, i32) {
    %c0_i32 = arith.constant 0 : i32
    %c0_i32_0 = arith.constant 0 : i32
    %c0_i32_1 = arith.constant 0 : i32
    return %c0_i32, %c0_i32_0 : i32, i32
  }
  func.func @transform_4(%arg0: i32) -> (i32, i32) {
    %c0_i32 = arith.constant 0 : i32
    %c0_i32_0 = arith.constant 0 : i32
    %c0_i32_1 = arith.constant 0 : i32
    return %c0_i32, %c0_i32_0 : i32, i32
  }
  func.func @transform_5(%arg0: i32) -> (i32, i32) {
    %c0_i32 = arith.constant 0 : i32
    %c0_i32_0 = arith.constant 0 : i32
    return %c0_i32, %arg0 : i32, i32
  }
}

</mosaic_0001>

<llo_original>
// kernel: tpu_custom_call.1
$region0: #{tpu_custom_call.1}
  #allocation0 [shape = 'u32[]', space=smem, size = 0x4, offset = 0x4, fixed_abs, tag = 'smem constant byte address 0x4 - core index']
  #allocation1 [shape = 'u32[144,128]{1,0:T(1,128)}', space=vmem, size = 0x12000, scoped, tag = 'internal scratch']
  %s0 = inlined_call_operand.hbm [shape: f32[8,64,128], index: 0, kind: input, shape index: {}]
  %s1 = inlined_call_operand.vmem [shape: f32[24,64], index: 1, kind: input, shape index: {}]
  %s2 = inlined_call_operand.vmem [shape: f32[24,8], index: 2, kind: input, shape index: {}]
  %s3 = inlined_call_operand.vmem [shape: f32[16,8], index: 3, kind: input, shape index: {}]
  %s4 = inlined_call_operand.vmem [shape: f32[48,1], index: 4, kind: input, shape index: {}]
  %s5 = inlined_call_operand.hbm [shape: f32[16,128], index: 5, kind: output, shape index: {}]
  %s6 = sld [smem:[#allocation0]]
  $region34: #{tpu_custom_call.1} parent=0
    _
  %s8 = ssub.s32 1, %s6
  %s9 = scalar_select 0, %s8, %s6
  $region1: #{tpu_custom_call.1} parent=0
    #allocation2 [shape = 'u8[262144]{0}', space=vmem, size = 0x40000, scoped, tag = 'input window, operand 0, single buffered']
    #allocation3 [shape = 's32[1]{0}', space=sflag, size = 0x4, scoped, tag = 'scoped memory for tpu_custom_call.1']
    #allocation4 [shape = 's32[1]{0}', space=sflag, size = 0x4, scoped, tag = 'scoped memory for tpu_custom_call.1']
    #allocation5 [shape = 'u8[8192]{0}', space=vmem, size = 0x2000, scoped, tag = 'output window, operand 0, single buffered']
    %10 = vsyncpa [#allocation3], 0
    %11 = vsyncpa [#allocation4], 0
    // Predicated region
    $region2: #{tpu_custom_call.1} parent=1 // pred_check
      _
    $region3: #{tpu_custom_call.1} parent=1 // pred_check_branch
      %13 = sbr.rel (0) target = $region5
    $region4: #{tpu_custom_call.1} parent=1 // pred_region
      %s15 = ssub.s32 8192, 8192
      %16 = vsyncadd [#allocation3], %s15
      %s17 = sshll.u32 [#allocation2], 4
      %s18 = int_to_ptr.vmem [resolvable:$true] %s17
      %23 = dma.hbm_to_vmem [thread:$0]  %s0, 8192, %s18, [#allocation3], 128, 128, 8
    $region5: #{tpu_custom_call.1} parent=1 // pred_fallthru
      _
    // Predicated region
    $region6: #{tpu_custom_call.1} parent=1 // pred_check
      _
    $region7: #{tpu_custom_call.1} parent=1 // pred_check_branch
      %25 = sbr.rel (0) target = $region9
    $region8: #{tpu_custom_call.1} parent=1 // pred_region
      _
    $region9: #{tpu_custom_call.1} parent=1 // pred_fallthru
      _
    // Predicated region
    $region10: #{tpu_custom_call.1} parent=1 // pred_check
      _
    $region11: #{tpu_custom_call.1} parent=1 // pred_check_branch
      %27 = sbr.rel (0) target = $region13
    $region12: #{tpu_custom_call.1} parent=1 // pred_region
      _
    $region13: #{tpu_custom_call.1} parent=1 // pred_fallthru
      _
    // Predicated region
    $region14: #{tpu_custom_call.1} parent=1 // pred_check
      _
    $region15: #{tpu_custom_call.1} parent=1 // pred_check_branch
      %29 = sbr.rel (0) target = $region17
    $region16: #{tpu_custom_call.1} parent=1 // pred_region
      _
    $region17: #{tpu_custom_call.1} parent=1 // pred_fallthru
      _
    // Predicated region
    $region18: #{tpu_custom_call.1} parent=1 // pred_check
      _
    $region19: #{tpu_custom_call.1} parent=1 // pred_check_branch
      %31 = sbr.rel (0) target = $region21
    $region20: #{tpu_custom_call.1} parent=1 // pred_region
      _
    $region21: #{tpu_custom_call.1} parent=1 // pred_fallthru
      _
    // Predicated region
    $region22: #{tpu_custom_call.1} parent=1 // pred_check
      _
    $region23: #{tpu_custom_call.1} parent=1 // pred_check_branch
      %33 = sbr.rel (0) target = $region25
    $region24: #{tpu_custom_call.1} parent=1 // pred_region
      %34 = dma.done [#allocation3], 8192
    $region25: #{tpu_custom_call.1} parent=1 // pred_fallthru
      _
    %v35 = vld [vmem:[%s1] sm:$0xff]
    %v36 = vld [vmem:[%s1 + $0x8] sm:$0xff]
    %v37 = vld [vmem:[%s1 + $0x10] sm:$0xff]
    %v38 = vld [vmem:[%s2] sm:$0xff]
    %v39 = vld [vmem:[%s2 + $0x8] sm:$0xff]
    %v40 = vld [vmem:[%s2 + $0x10] sm:$0xff]
    %v41 = vld [vmem:[%s4] sm:$0xff]
    %v42 = vld [vmem:[%s4 + $0x8] sm:$0xff]
    %v43 = vld [vmem:[%s4 + $0x10] sm:$0xff]
    %45 = vset.pattern.permute.xlu0 0
    %46 = vperm.xlu0 %45, %v41
    %v47 = vpop.permute.xlu0 %46
    %50 = vset.pattern.permute.xlu0 0
    %51 = vperm.xlu0 %50, %v42
    %v52 = vpop.permute.xlu0 %51
    %55 = vset.pattern.permute.xlu0 0
    %56 = vperm.xlu0 %55, %v43
    %v57 = vpop.permute.xlu0 %56
    %v59 = vld [vmem:[%s4 + $0x18] sm:$0xff]
    %61 = vset.pattern.permute.xlu0 0
    %62 = vperm.xlu0 %61, %v59
    %v63 = vpop.permute.xlu0 %62
    %v65 = vld [vmem:[%s4 + $0x20] sm:$0xff]
    %v66 = vld [vmem:[%s4 + $0x28] sm:$0xff]
    %68 = vset.pattern.permute.xlu0 0
    %69 = vperm.xlu0 %68, %v65
    %v70 = vpop.permute.xlu0 %69
    %73 = vset.pattern.permute.xlu0 0
    %74 = vperm.xlu0 %73, %v66
    %v75 = vpop.permute.xlu0 %74
    %v77 = vld [vmem:[#allocation2] sm:$0xff]
    %v78 = vld [vmem:[#allocation2 + $0x8] sm:$0xff]
    %v79 = vld [vmem:[#allocation2 + $0x10] sm:$0xff]
    %v80 = vld [vmem:[#allocation2 + $0x18] sm:$0xff]
    %v81 = vld [vmem:[#allocation2 + $0x20] sm:$0xff]
    %v82 = vld [vmem:[#allocation2 + $0x28] sm:$0xff]
    %v83 = vld [vmem:[#allocation2 + $0x30] sm:$0xff]
    %v84 = vld [vmem:[#allocation2 + $0x38] sm:$0xff]
    %vm85 = vcmask 523264
    %v87 = vsel %vm85, %v35, 0
    %v90 = vsel %vm85, %v36, 0
    %v93 = vsel %vm85, %v37, 0
    %95 = vmatprep.subr.mxu0 0.0
    %96 = vmatpush1.msra.mxu0 0.0
    %97 = vmatprep.subr.mxu0 0.0
    %98 = vmatpush1.msra.mxu0 0.0
    %99 = vmatprep.subr.mxu0 0.0
    %100 = vmatpush1.msra.mxu0 0.0
    %101 = vmatprep.subr.mxu0 0.0
    %102 = vmatpush1.msra.mxu0 0.0
    %103 = vmatprep.subr.mxu0 0.0
    %104 = vmatpush1.msra.mxu0 0.0
    %105 = vmatprep.subr.mxu0 0.0
    %106 = vmatpush1.msra.mxu0 0.0
    %107 = vmatprep.subr.mxu0 0.0
    %108 = vmatpush1.msra.mxu0 0.0
    %109 = vmatprep.subr.mxu0 0.0
    %110 = vmatpush1.msra.mxu0 0.0
    %111 = vmatprep.subr.mxu0 0.0
    %112 = vmatpush1.msra.mxu0 %v84
    %113 = vmatprep.subr.mxu0 0.0
    %114 = vmatpush1.msra.mxu0 %v83
    %115 = vmatprep.subr.mxu0 0.0
    %116 = vmatpush1.msra.mxu0 %v82
    %117 = vmatprep.subr.mxu0 0.0
    %118 = vmatpush1.msra.mxu0 %v81
    %119 = vmatprep.subr.mxu0 0.0
    %120 = vmatpush1.msra.mxu0 %v80
    %121 = vmatprep.subr.mxu0 0.0
    %122 = vmatpush1.msra.mxu0 %v79
    %123 = vmatprep.subr.mxu0 0.0
    %124 = vmatpush1.msra.mxu0 %v78
    %125 = vmatprep.subr.mxu0 0.0
    %126 = vmatpush1.msra.mxu0 %v77
    %127 = vmatprep.subr.mxu0 0.0
    %128 = vmatpush2.msra.mxu0 0.0
    %129 = vmatprep.subr.mxu0 0.0
    %130 = vmatpush2.msra.mxu0 0.0
    %131 = vmatprep.subr.mxu0 0.0
    %132 = vmatpush2.msra.mxu0 0.0
    %133 = vmatprep.subr.mxu0 0.0
    %134 = vmatpush2.msra.mxu0 0.0
    %135 = vmatprep.subr.mxu0 0.0
    %136 = vmatpush2.msra.mxu0 0.0
    %137 = vmatprep.subr.mxu0 0.0
    %138 = vmatpush2.msra.mxu0 0.0
    %139 = vmatprep.subr.mxu0 0.0
    %140 = vmatpush2.msra.mxu0 0.0
    %141 = vmatprep.subr.mxu0 0.0
    %142 = vmatpush2.msra.mxu0 0.0
    %143 = vmatprep.subr.mxu0 0.0
    %144 = vmatpush2.msra.mxu0 0.0
    %145 = vmatprep.subr.mxu0 0.0
    %146 = vmatpush2.msra.mxu0 0.0
    %147 = vmatprep.subr.mxu0 0.0
    %148 = vmatpush2.msra.mxu0 0.0
    %149 = vmatprep.subr.mxu0 0.0
    %150 = vmatpush2.msra.mxu0 0.0
    %151 = vmatprep.subr.mxu0 0.0
    %152 = vmatpush2.msra.mxu0 0.0
    %153 = vmatprep.subr.mxu0 0.0
    %154 = vmatpush2.msra.mxu0 0.0
    %155 = vmatprep.subr.mxu0 0.0
    %156 = vmatpush2.msra.mxu0 0.0
    %157 = vmatprep.subr.mxu0 0.0
    %158 = vmatpush2.msra.mxu0 0.0
    %159 = vmatprep.mubr.f32.mxu0 0.0
    %160 = vmatmul.mubr.f32.gmra.mxu0 %v87
    %v161 = vpop.f32.mrf.mxu0
    %v162 = vadd.f32 %v47, %v161
    %v163 = vpop.f32.mrf.mxu0
    %164 = vmatprep.mubr.f32.mxu0 0.0
    %165 = vmatmul.mubr.f32.gmra.mxu0 %v90
    %v166 = vpop.f32.mrf.mxu0
    %v167 = vadd.f32 %v52, %v166
    %v168 = vpop.f32.mrf.mxu0
    %169 = vmatprep.mubr.f32.mxu0 0.0
    %170 = vmatmul.mubr.f32.gmra.mxu0 %v93
    %v171 = vpop.f32.mrf.mxu0
    %v172 = vadd.f32 %v57, %v171
    %v173 = vpop.f32.mrf.mxu0
    %174 = vdwg.mxu0
    %vm175 = vcmask 64512
    %v177 = vsel %vm175, %v38, 0
    %v180 = vsel %vm175, %v39, 0
    %v183 = vsel %vm175, %v40, 0
    %185 = vmatprep.subr.mxu0 0.0
    %186 = vmatpush1.msra.mxu0 0.0
    %187 = vmatprep.subr.mxu0 0.0
    %188 = vmatpush1.msra.mxu0 0.0
    %189 = vmatprep.subr.mxu0 0.0
    %190 = vmatpush1.msra.mxu0 0.0
    %191 = vmatprep.subr.mxu0 0.0
    %192 = vmatpush1.msra.mxu0 0.0
    %193 = vmatprep.subr.mxu0 0.0
    %194 = vmatpush1.msra.mxu0 0.0
    %195 = vmatprep.subr.mxu0 0.0
    %196 = vmatpush1.msra.mxu0 0.0
    %197 = vmatprep.subr.mxu0 0.0
    %198 = vmatpush1.msra.mxu0 0.0
    %199 = vmatprep.subr.mxu0 0.0
    %200 = vmatpush1.msra.mxu0 0.0
    %201 = vmatprep.subr.mxu0 0.0
    %202 = vmatpush1.msra.mxu0 0.0
    %203 = vmatprep.subr.mxu0 0.0
    %204 = vmatpush1.msra.mxu0 0.0
    %205 = vmatprep.subr.mxu0 0.0
    %206 = vmatpush1.msra.mxu0 0.0
    %207 = vmatprep.subr.mxu0 0.0
    %208 = vmatpush1.msra.mxu0 0.0
    %209 = vmatprep.subr.mxu0 0.0
    %210 = vmatpush1.msra.mxu0 0.0
    %211 = vmatprep.subr.mxu0 0.0
    %212 = vmatpush1.msra.mxu0 0.0
    %213 = vmatprep.subr.mxu0 0.0
    %214 = vmatpush1.msra.mxu0 0.0
    %215 = vmatprep.subr.mxu0 0.0
    %216 = vmatpush1.msra.mxu0 0.0
    %217 = vmatprep.subr.mxu0 0.0
    %218 = vmatpush2.msra.mxu0 0.0
    %219 = vmatprep.subr.mxu0 0.0
    %220 = vmatpush2.msra.mxu0 0.0
    %221 = vmatprep.subr.mxu0 0.0
    %222 = vmatpush2.msra.mxu0 0.0
    %223 = vmatprep.subr.mxu0 0.0
    %224 = vmatpush2.msra.mxu0 0.0
    %225 = vmatprep.subr.mxu0 0.0
    %226 = vmatpush2.msra.mxu0 0.0
    %227 = vmatprep.subr.mxu0 0.0
    %228 = vmatpush2.msra.mxu0 0.0
    %229 = vmatprep.subr.mxu0 0.0
    %230 = vmatpush2.msra.mxu0 0.0
    %231 = vmatprep.subr.mxu0 0.0
    %232 = vmatpush2.msra.mxu0 0.0
    %233 = vmatprep.subr.mxu0 0.0
    %234 = vmatpush2.msra.mxu0 0.0
    %235 = vmatprep.subr.mxu0 0.0
    %236 = vmatpush2.msra.mxu0 0.0
    %237 = vmatprep.subr.mxu0 0.0
    %238 = vmatpush2.msra.mxu0 0.0
    %239 = vmatprep.subr.mxu0 0.0
    %240 = vmatpush2.msra.mxu0 0.0
    %241 = vmatprep.subr.mxu0 0.0
    %242 = vmatpush2.msra.mxu0 0.0
    %243 = vmatprep.subr.mxu0 0.0
    %244 = vmatpush2.msra.mxu0 0.0
    %245 = vmatprep.subr.mxu0 0.0
    %246 = vmatpush2.msra.mxu0 0.0
    %247 = vmatprep.subr.mxu0 0.0
    %248 = vmatpush2.msra.mxu0 0.0
    %249 = vmatprep.mubr.f32.mxu0 0.0
    %250 = vmatmul.mubr.f32.gmra.mxu0 %v177
    %v251 = vpop.f32.mrf.mxu0
    %v252 = vadd.f32 0.0, %v251
    %v253 = vpop.f32.mrf.mxu0
    %254 = vmatprep.mubr.f32.mxu0 0.0
    %255 = vmatmul.mubr.f32.gmra.mxu0 %v180
    %v256 = vpop.f32.mrf.mxu0
    %v257 = vadd.f32 0.0, %v256
    %v258 = vpop.f32.mrf.mxu0
    %259 = vmatprep.mubr.f32.mxu0 0.0
    %260 = vmatmul.mubr.f32.gmra.mxu0 %v183
    %v261 = vpop.f32.mrf.mxu0
    %v262 = vadd.f32 0.0, %v261
    %v263 = vpop.f32.mrf.mxu0
    %264 = vdwg.mxu0
    %v265 = vadd.f32 %v162, %v252
    %v266 = vxor.u32 %v265, 2147483648
    %v267 = vmul.f32 %v266, 1.442695
    %v268 = vpow.pop %v267
    %v269 = vadd.f32 %v268, 1.0
    %v270 = vrcp.pop %v269
    %v271 = vmul.f32 1.0, %v270
    %v272 = vadd.f32 %v167, %v257
    %v273 = vxor.u32 %v272, 2147483648
    %v274 = vmul.f32 %v273, 1.442695
    %v275 = vpow.pop %v274
    %v276 = vadd.f32 %v275, 1.0
    %v277 = vrcp.pop %v276
    %v278 = vmul.f32 1.0, %v277
    %v279 = vadd.f32 %v262, %v63
    %v280 = vmul.f32 %v271, %v279
    %v281 = vadd.f32 %v172, %v280
    %v282 = vtanh.pop %v281
    %v283 = vsub.f32 1.0, %v278
    %v284 = vmul.f32 %v283, %v282
    %v285 = vmul.f32 %v278, 0.0
    %v286 = vadd.f32 %v284, %v285
    %s287 = scalar_lea.vmem [#allocation2], 64
    %v288 = vld [vmem:[%s287] sm:$0xff]
    %v289 = vld [vmem:[%s287 + $0x8] sm:$0xff]
    %v290 = vld [vmem:[%s287 + $0x10] sm:$0xff]
    %v291 = vld [vmem:[%s287 + $0x18] sm:$0xff]
    %v292 = vld [vmem:[%s287 + $0x20] sm:$0xff]
    %v293 = vld [vmem:[%s287 + $0x28] sm:$0xff]
    %v294 = vld [vmem:[%s287 + $0x30] sm:$0xff]
    %v295 = vld [vmem:[%s287 + $0x38] sm:$0xff]
    %296 = vmatprep.subr.mxu0 0.0
    %297 = vmatpush1.msra.mxu0 0.0
    %298 = vmatprep.subr.mxu0 0.0
    %299 = vmatpush1.msra.mxu0 0.0
    %300 = vmatprep.subr.mxu0 0.0
    %301 = vmatpush1.msra.mxu0 0.0
    %302 = vmatprep.subr.mxu0 0.0
    %303 = vmatpush1.msra.mxu0 0.0
    %304 = vmatprep.subr.mxu0 0.0
    %305 = vmatpush1.msra.mxu0 0.0
    %306 = vmatprep.subr.mxu0 0.0
    %307 = vmatpush1.msra.mxu0 0.0
    %308 = vmatprep.subr.mxu0 0.0
    %309 = vmatpush1.msra.mxu0 0.0
    %310 = vmatprep.subr.mxu0 0.0
    %311 = vmatpush1.msra.mxu0 0.0
    %312 = vmatprep.subr.mxu0 0.0
    %313 = vmatpush1.msra.mxu0 %v295
    %314 = vmatprep.subr.mxu0 0.0
    %315 = vmatpush1.msra.mxu0 %v294
    %316 = vmatprep.subr.mxu0 0.0
    %317 = vmatpush1.msra.mxu0 %v293
    %318 = vmatprep.subr.mxu0 0.0
    %319 = vmatpush1.msra.mxu0 %v292
    %320 = vmatprep.subr.mxu0 0.0
    %321 = vmatpush1.msra.mxu0 %v291
    %322 = vmatprep.subr.mxu0 0.0
    %323 = vmatpush1.msra.mxu0 %v290
    %324 = vmatprep.subr.mxu0 0.0
    %325 = vmatpush1.msra.mxu0 %v289
    %326 = vmatprep.subr.mxu0 0.0
    %327 = vmatpush1.msra.mxu0 %v288
    %328 = vmatprep.subr.mxu0 0.0
    %329 = vmatpush2.msra.mxu0 0.0
    %330 = vmatprep.subr.mxu0 0.0
    %331 = vmatpush2.msra.mxu0 0.0
    %332 = vmatprep.subr.mxu0 0.0
    %333 = vmatpush2.msra.mxu0 0.0
    %334 = vmatprep.subr.mxu0 0.0
    %335 = vmatpush2.msra.mxu0 0.0
    %336 = vmatprep.subr.mxu0 0.0
    %337 = vmatpush2.msra.mxu0 0.0
    %338 = vmatprep.subr.mxu0 0.0
    %339 = vmatpush2.msra.mxu0 0.0
    %340 = vmatprep.subr.mxu0 0.0
    %341 = vmatpush2.msra.mxu0 0.0
    %342 = vmatprep.subr.mxu0 0.0
    %343 = vmatpush2.msra.mxu0 0.0
    %344 = vmatprep.subr.mxu0 0.0
    %345 = vmatpush2.msra.mxu0 0.0
    %346 = vmatprep.subr.mxu0 0.0
    %347 = vmatpush2.msra.mxu0 0.0
    %348 = vmatprep.subr.mxu0 0.0
    %349 = vmatpush2.msra.mxu0 0.0
    %350 = vmatprep.subr.mxu0 0.0
    %351 = vmatpush2.msra.mxu0 0.0
    %352 = vmatprep.subr.mxu0 0.0
    %353 = vmatpush2.msra.mxu0 0.0
    %354 = vmatprep.subr.mxu0 0.0
    %355 = vmatpush2.msra.mxu0 0.0
    %356 = vmatprep.subr.mxu0 0.0
    %357 = vmatpush2.msra.mxu0 0.0
    %358 = vmatprep.subr.mxu0 0.0
    %359 = vmatpush2.msra.mxu0 0.0
    %360 = vmatprep.mubr.f32.mxu0 0.0
    %361 = vmatmul.mubr.f32.gmra.mxu0 %v87
    %v362 = vpop.f32.mrf.mxu0
    %v363 = vadd.f32 %v47, %v362
    %v364 = vpop.f32.mrf.mxu0
    %365 = vmatprep.mubr.f32.mxu0 0.0
    %366 = vmatmul.mubr.f32.gmra.mxu0 %v90
    %v367 = vpop.f32.mrf.mxu0
    %v368 = vadd.f32 %v52, %v367
    %v369 = vpop.f32.mrf.mxu0
    %370 = vmatprep.mubr.f32.mxu0 0.0
    %371 = vmatmul.mubr.f32.gmra.mxu0 %v93
    %v372 = vpop.f32.mrf.mxu0
    %v373 = vadd.f32 %v57, %v372
    %v374 = vpop.f32.mrf.mxu0
    %375 = vdwg.mxu0
    %376 = vmatprep.subr.mxu0 0.0
    %377 = vmatpush1.msra.mxu0 0.0
    %378 = vmatprep.subr.mxu0 0.0
    %379 = vmatpush1.msra.mxu0 0.0
    %380 = vmatprep.subr.mxu0 0.0
    %381 = vmatpush1.msra.mxu0 0.0
    %382 = vmatprep.subr.mxu0 0.0
    %383 = vmatpush1.msra.mxu0 0.0
    %384 = vmatprep.subr.mxu0 0.0
    %385 = vmatpush1.msra.mxu0 0.0
    %386 = vmatprep.subr.mxu0 0.0
    %387 = vmatpush1.msra.mxu0 0.0
    %388 = vmatprep.subr.mxu0 0.0
    %389 = vmatpush1.msra.mxu0 0.0
    %390 = vmatprep.subr.mxu0 0.0
    %391 = vmatpush1.msra.mxu0 0.0
    %392 = vmatprep.subr.mxu0 0.0
    %393 = vmatpush1.msra.mxu0 0.0
    %394 = vmatprep.subr.mxu0 0.0
    %395 = vmatpush1.msra.mxu0 0.0
    %396 = vmatprep.subr.mxu0 0.0
    %397 = vmatpush1.msra.mxu0 0.0
    %398 = vmatprep.subr.mxu0 0.0
    %399 = vmatpush1.msra.mxu0 0.0
    %400 = vmatprep.subr.mxu0 0.0
    %401 = vmatpush1.msra.mxu0 0.0
    %402 = vmatprep.subr.mxu0 0.0
    %403 = vmatpush1.msra.mxu0 0.0
    %404 = vmatprep.subr.mxu0 0.0
    %405 = vmatpush1.msra.mxu0 0.0
    %406 = vmatprep.subr.mxu0 0.0
    %407 = vmatpush1.msra.mxu0 %v286
    %408 = vmatprep.subr.mxu0 0.0
    %409 = vmatpush2.msra.mxu0 0.0
    %410 = vmatprep.subr.mxu0 0.0
    %411 = vmatpush2.msra.mxu0 0.0
    %412 = vmatprep.subr.mxu0 0.0
    %413 = vmatpush2.msra.mxu0 0.0
    %414 = vmatprep.subr.mxu0 0.0
    %415 = vmatpush2.msra.mxu0 0.0
    %416 = vmatprep.subr.mxu0 0.0
    %417 = vmatpush2.msra.mxu0 0.0
    %418 = vmatprep.subr.mxu0 0.0
    %419 = vmatpush2.msra.mxu0 0.0
    %420 = vmatprep.subr.mxu0 0.0
    %421 = vmatpush2.msra.mxu0 0.0
    %422 = vmatprep.subr.mxu0 0.0
    %423 = vmatpush2.msra.mxu0 0.0
    %424 = vmatprep.subr.mxu0 0.0
    %425 = vmatpush2.msra.mxu0 0.0
    %426 = vmatprep.subr.mxu0 0.0
    %427 = vmatpush2.msra.mxu0 0.0
    %428 = vmatprep.subr.mxu0 0.0
    %429 = vmatpush2.msra.mxu0 0.0
    %430 = vmatprep.subr.mxu0 0.0
    %431 = vmatpush2.msra.mxu0 0.0
    %432 = vmatprep.subr.mxu0 0.0
    %433 = vmatpush2.msra.mxu0 0.0
    %434 = vmatprep.subr.mxu0 0.0
    %435 = vmatpush2.msra.mxu0 0.0
    %436 = vmatprep.subr.mxu0 0.0
    %437 = vmatpush2.msra.mxu0 0.0
    %438 = vmatprep.subr.mxu0 0.0
    %439 = vmatpush2.msra.mxu0 0.0
    %440 = vmatprep.mubr.f32.mxu0 0.0
    %441 = vmatmul.mubr.f32.gmra.mxu0 %v177
    %v442 = vpop.f32.mrf.mxu0
    %v443 = vadd.f32 0.0, %v442
    %v444 = vpop.f32.mrf.mxu0
    %445 = vmatprep.mubr.f32.mxu0 0.0
    %446 = vmatmul.mubr.f32.gmra.mxu0 %v180
    %v447 = vpop.f32.mrf.mxu0
    %v448 = vadd.f32 0.0, %v447
    %v449 = vpop.f32.mrf.mxu0
    %450 = vmatprep.mubr.f32.mxu0 0.0
    %451 = vmatmul.mubr.f32.gmra.mxu0 %v183
    %v452 = vpop.f32.mrf.mxu0
    %v453 = vadd.f32 0.0, %v452
    %v454 = vpop.f32.mrf.mxu0
    %455 = vdwg.mxu0
    %v456 = vadd.f32 %v363, %v443
    %v457 = vxor.u32 %v456, 2147483648
    %v458 = vmul.f32 %v457, 1.442695
    %v459 = vpow.pop %v458
    %v460 = vadd.f32 %v459, 1.0
    %v461 = vrcp.pop %v460
    %v462 = vmul.f32 1.0, %v461
    %v463 = vadd.f32 %v368, %v448
    %v464 = vxor.u32 %v463, 2147483648
    %v465 = vmul.f32 %v464, 1.442695
    %v466 = vpow.pop %v465
    %v467 = vadd.f32 %v466, 1.0
    %v468 = vrcp.pop %v467
    %v469 = vmul.f32 1.0, %v468
    %v470 = vadd.f32 %v453, %v63
    %v471 = vmul.f32 %v462, %v470
    %v472 = vadd.f32 %v373, %v471
    %v473 = vtanh.pop %v472
    %v474 = vsub.f32 1.0, %v469
    %v475 = vmul.f32 %v474, %v473
    %v476 = vmul.f32 %v469, %v286
    %v477 = vadd.f32 %v475, %v476
    %s478 = scalar_lea.vmem [#allocation2], 128
    %v479 = vld [vmem:[%s478] sm:$0xff]
    %v480 = vld [vmem:[%s478 + $0x8] sm:$0xff]
    %v481 = vld [vmem:[%s478 + $0x10] sm:$0xff]
    %v482 = vld [vmem:[%s478 + $0x18] sm:$0xff]
    %v483 = vld [vmem:[%s478 + $0x20] sm:$0xff]
    %v484 = vld [vmem:[%s478 + $0x28] sm:$0xff]
    %v485 = vld [vmem:[%s478 + $0x30] sm:$0xff]
    %v486 = vld [vmem:[%s478 + $0x38] sm:$0xff]
    %487 = vmatprep.subr.mxu0 0.0
    %488 = vmatpush1.msra.mxu0 0.0
    %489 = vmatprep.subr.mxu0 0.0
    %490 = vmatpush1.msra.mxu0 0.0
    %491 = vmatprep.subr.mxu0 0.0
    %492 = vmatpush1.msra.mxu0 0.0
    %493 = vmatprep.subr.mxu0 0.0
    %494 = vmatpush1.msra.mxu0 0.0
    %495 = vmatprep.subr.mxu0 0.0
    %496 = vmatpush1.msra.mxu0 0.0
    %497 = vmatprep.subr.mxu0 0.0
    %498 = vmatpush1.msra.mxu0 0.0
    %499 = vmatprep.subr.mxu0 0.0
    %500 = vmatpush1.msra.mxu0 0.0
    %501 = vmatprep.subr.mxu0 0.0
    %502 = vmatpush1.msra.mxu0 0.0
    %503 = vmatprep.subr.mxu0 0.0
    %504 = vmatpush1.msra.mxu0 %v486
    %505 = vmatprep.subr.mxu0 0.0
    %506 = vmatpush1.msra.mxu0 %v485
    %507 = vmatprep.subr.mxu0 0.0
    %508 = vmatpush1.msra.mxu0 %v484
    %509 = vmatprep.subr.mxu0 0.0
    %510 = vmatpush1.msra.mxu0 %v483
    %511 = vmatprep.subr.mxu0 0.0
    %512 = vmatpush1.msra.mxu0 %v482
    %513 = vmatprep.subr.mxu0 0.0
    %514 = vmatpush1.msra.mxu0 %v481
    %515 = vmatprep.subr.mxu0 0.0
    %516 = vmatpush1.msra.mxu0 %v480
    %517 = vmatprep.subr.mxu0 0.0
    %518 = vmatpush1.msra.mxu0 %v479
    %519 = vmatprep.subr.mxu0 0.0
    %520 = vmatpush2.msra.mxu0 0.0
    %521 = vmatprep.subr.mxu0 0.0
    %522 = vmatpush2.msra.mxu0 0.0
    %523 = vmatprep.subr.mxu0 0.0
    %524 = vmatpush2.msra.mxu0 0.0
    %525 = vmatprep.subr.mxu0 0.0
    %526 = vmatpush2.msra.mxu0 0.0
    %527 = vmatprep.subr.mxu0 0.0
    %528 = vmatpush2.msra.mxu0 0.0
    %529 = vmatprep.subr.mxu0 0.0
    %530 = vmatpush2.msra.mxu0 0.0
    %531 = vmatprep.subr.mxu0 0.0
    %532 = vmatpush2.msra.mxu0 0.0
    %533 = vmatprep.subr.mxu0 0.0
    %534 = vmatpush2.msra.mxu0 0.0
    %535 = vmatprep.subr.mxu0 0.0
    %536 = vmatpush2.msra.mxu0 0.0
    %537 = vmatprep.subr.mxu0 0.0
    %538 = vmatpush2.msra.mxu0 0.0
    %539 = vmatprep.subr.mxu0 0.0
    %540 = vmatpush2.msra.mxu0 0.0
    %541 = vmatprep.subr.mxu0 0.0
    %542 = vmatpush2.msra.mxu0 0.0
    %543 = vmatprep.subr.mxu0 0.0
    %544 = vmatpush2.msra.mxu0 0.0
    %545 = vmatprep.subr.mxu0 0.0
    %546 = vmatpush2.msra.mxu0 0.0
    %547 = vmatprep.subr.mxu0 0.0
    %548 = vmatpush2.msra.mxu0 0.0
    %549 = vmatprep.subr.mxu0 0.0
    %550 = vmatpush2.msra.mxu0 0.0
    %551 = vmatprep.mubr.f32.mxu0 0.0
    %552 = vmatmul.mubr.f32.gmra.mxu0 %v87
    %v553 = vpop.f32.mrf.mxu0
    %v554 = vadd.f32 %v47, %v553
    %v555 = vpop.f32.mrf.mxu0
    %556 = vmatprep.mubr.f32.mxu0 0.0
    %557 = vmatmul.mubr.f32.gmra.mxu0 %v90
    %v558 = vpop.f32.mrf.mxu0
    %v559 = vadd.f32 %v52, %v558
    %v560 = vpop.f32.mrf.mxu0
    %561 = vmatprep.mubr.f32.mxu0 0.0
    %562 = vmatmul.mubr.f32.gmra.mxu0 %v93
    %v563 = vpop.f32.mrf.mxu0
    %v564 = vadd.f32 %v57, %v563
    %v565 = vpop.f32.mrf.mxu0
    %566 = vdwg.mxu0
    %567 = vmatprep.subr.mxu0 0.0
    %568 = vmatpush1.msra.mxu0 0.0
    %569 = vmatprep.subr.mxu0 0.0
    %570 = vmatpush1.msra.mxu0 0.0
    %571 = vmatprep.subr.mxu0 0.0
    %572 = vmatpush1.msra.mxu0 0.0
    %573 = vmatprep.subr.mxu0 0.0
    %574 = vmatpush1.msra.mxu0 0.0
    %575 = vmatprep.subr.mxu0 0.0
    %576 = vmatpush1.msra.mxu0 0.0
    %577 = vmatprep.subr.mxu0 0.0
    %578 = vmatpush1.msra.mxu0 0.0
    %579 = vmatprep.subr.mxu0 0.0
    %580 = vmatpush1.msra.mxu0 0.0
    %581 = vmatprep.subr.mxu0 0.0
    %582 = vmatpush1.msra.mxu0 0.0
    %583 = vmatprep.subr.mxu0 0.0
    %584 = vmatpush1.msra.mxu0 0.0
    %585 = vmatprep.subr.mxu0 0.0
    %586 = vmatpush1.msra.mxu0 0.0
    %587 = vmatprep.subr.mxu0 0.0
    %588 = vmatpush1.msra.mxu0 0.0
    %589 = vmatprep.subr.mxu0 0.0
    %590 = vmatpush1.msra.mxu0 0.0
    %591 = vmatprep.subr.mxu0 0.0
    %592 = vmatpush1.msra.mxu0 0.0
    %593 = vmatprep.subr.mxu0 0.0
    %594 = vmatpush1.msra.mxu0 0.0
    %595 = vmatprep.subr.mxu0 0.0
    %596 = vmatpush1.msra.mxu0 0.0
    %597 = vmatprep.subr.mxu0 0.0
    %598 = vmatpush1.msra.mxu0 %v477
    %599 = vmatprep.subr.mxu0 0.0
    %600 = vmatpush2.msra.mxu0 0.0
    %601 = vmatprep.subr.mxu0 0.0
    %602 = vmatpush2.msra.mxu0 0.0
    %603 = vmatprep.subr.mxu0 0.0
    %604 = vmatpush2.msra.mxu0 0.0
    %605 = vmatprep.subr.mxu0 0.0
    %606 = vmatpush2.msra.mxu0 0.0
    %607 = vmatprep.subr.mxu0 0.0
    %608 = vmatpush2.msra.mxu0 0.0
    %609 = vmatprep.subr.mxu0 0.0
    %610 = vmatpush2.msra.mxu0 0.0
    %611 = vmatprep.subr.mxu0 0.0
    %612 = vmatpush2.msra.mxu0 0.0
    %613 = vmatprep.subr.mxu0 0.0
    %614 = vmatpush2.msra.mxu0 0.0
    %615 = vmatprep.subr.mxu0 0.0
    %616 = vmatpush2.msra.mxu0 0.0
    %617 = vmatprep.subr.mxu0 0.0
    %618 = vmatpush2.msra.mxu0 0.0
    %619 = vmatprep.subr.mxu0 0.0
    %620 = vmatpush2.msra.mxu0 0.0
    %621 = vmatprep.subr.mxu0 0.0
    %622 = vmatpush2.msra.mxu0 0.0
    %623 = vmatprep.subr.mxu0 0.0
    %624 = vmatpush2.msra.mxu0 0.0
    %625 = vmatprep.subr.mxu0 0.0
    %626 = vmatpush2.msra.mxu0 0.0
    %627 = vmatprep.subr.mxu0 0.0
    %628 = vmatpush2.msra.mxu0 0.0
    %629 = vmatprep.subr.mxu0 0.0
    %630 = vmatpush2.msra.mxu0 0.0
    %631 = vmatprep.mubr.f32.mxu0 0.0
    %632 = vmatmul.mubr.f32.gmra.mxu0 %v177
    %v633 = vpop.f32.mrf.mxu0
    %v634 = vadd.f32 0.0, %v633
    %v635 = vpop.f32.mrf.mxu0
    %636 = vmatprep.mubr.f32.mxu0 0.0
    %637 = vmatmul.mubr.f32.gmra.mxu0 %v180
    %v638 = vpop.f32.mrf.mxu0
    %v639 = vadd.f32 0.0, %v638
    %v640 = vpop.f32.mrf.mxu0
    %641 = vmatprep.mubr.f32.mxu0 0.0
    %642 = vmatmul.mubr.f32.gmra.mxu0 %v183
    %v643 = vpop.f32.mrf.mxu0
    %v644 = vadd.f32 0.0, %v643
    %v645 = vpop.f32.mrf.mxu0
    %646 = vdwg.mxu0
    %v647 = vadd.f32 %v554, %v634
    %v648 = vxor.u32 %v647, 2147483648
    %v649 = vmul.f32 %v648, 1.442695
    %v650 = vpow.pop %v649
    %v651 = vadd.f32 %v650, 1.0
    %v652 = vrcp.pop %v651
    %v653 = vmul.f32 1.0, %v652
    %v654 = vadd.f32 %v559, %v639
    %v655 = vxor.u32 %v654, 2147483648
    %v656 = vmul.f32 %v655, 1.442695
    %v657 = vpow.pop %v656
    %v658 = vadd.f32 %v657, 1.0
    %v659 = vrcp.pop %v658
    %v660 = vmul.f32 1.0, %v659
    %v661 = vadd.f32 %v644, %v63
    %v662 = vmul.f32 %v653, %v661
    %v663 = vadd.f32 %v564, %v662
    %v664 = vtanh.pop %v663
    %v665 = vsub.f32 1.0, %v660
    %v666 = vmul.f32 %v665, %v664
    %v667 = vmul.f32 %v660, %v477
    %v668 = vadd.f32 %v666, %v667
    %s669 = scalar_lea.vmem [#allocation2], 192
    %v670 = vld [vmem:[%s669] sm:$0xff]
    %v671 = vld [vmem:[%s669 + $0x8] sm:$0xff]
    %v672 = vld [vmem:[%s669 + $0x10] sm:$0xff]
    %v673 = vld [vmem:[%s669 + $0x18] sm:$0xff]
    %v674 = vld [vmem:[%s669 + $0x20] sm:$0xff]
    %v675 = vld [vmem:[%s669 + $0x28] sm:$0xff]
    %v676 = vld [vmem:[%s669 + $0x30] sm:$0xff]
    %v677 = vld [vmem:[%s669 + $0x38] sm:$0xff]
    %678 = vmatprep.subr.mxu0 0.0
    %679 = vmatpush1.msra.mxu0 0.0
    %680 = vmatprep.subr.mxu0 0.0
    %681 = vmatpush1.msra.mxu0 0.0
    %682 = vmatprep.subr.mxu0 0.0
    %683 = vmatpush1.msra.mxu0 0.0
    %684 = vmatprep.subr.mxu0 0.0
    %685 = vmatpush1.msra.mxu0 0.0
    %686 = vmatprep.subr.mxu0 0.0
    %687 = vmatpush1.msra.mxu0 0.0
    %688 = vmatprep.subr.mxu0 0.0
    %689 = vmatpush1.msra.mxu0 0.0
    %690 = vmatprep.subr.mxu0 0.0
    %691 = vmatpush1.msra.mxu0 0.0
    %692 = vmatprep.subr.mxu0 0.0
    %693 = vmatpush1.msra.mxu0 0.0
    %694 = vmatprep.subr.mxu0 0.0
    %695 = vmatpush1.msra.mxu0 %v677
    %696 = vmatprep.subr.mxu0 0.0
    %697 = vmatpush1.msra.mxu0 %v676
    %698 = vmatprep.subr.mxu0 0.0
    %699 = vmatpush1.msra.mxu0 %v675
    %700 = vmatprep.subr.mxu0 0.0
    %701 = vmatpush1.msra.mxu0 %v674
    %702 = vmatprep.subr.mxu0 0.0
    %703 = vmatpush1.msra.mxu0 %v673
    %704 = vmatprep.subr.mxu0 0.0
    %705 = vmatpush1.msra.mxu0 %v672
    %706 = vmatprep.subr.mxu0 0.0
    %707 = vmatpush1.msra.mxu0 %v671
    %708 = vmatprep.subr.mxu0 0.0
    %709 = vmatpush1.msra.mxu0 %v670
    %710 = vmatprep.subr.mxu0 0.0
    %711 = vmatpush2.msra.mxu0 0.0
    %712 = vmatprep.subr.mxu0 0.0
    %713 = vmatpush2.msra.mxu0 0.0
    %714 = vmatprep.subr.mxu0 0.0
    %715 = vmatpush2.msra.mxu0 0.0
    %716 = vmatprep.subr.mxu0 0.0
    %717 = vmatpush2.msra.mxu0 0.0
    %718 = vmatprep.subr.mxu0 0.0
    %719 = vmatpush2.msra.mxu0 0.0
    %720 = vmatprep.subr.mxu0 0.0
    %721 = vmatpush2.msra.mxu0 0.0
    %722 = vmatprep.subr.mxu0 0.0
    %723 = vmatpush2.msra.mxu0 0.0
    %724 = vmatprep.subr.mxu0 0.0
    %725 = vmatpush2.msra.mxu0 0.0
    %726 = vmatprep.subr.mxu0 0.0
    %727 = vmatpush2.msra.mxu0 0.0
    %728 = vmatprep.subr.mxu0 0.0
    %729 = vmatpush2.msra.mxu0 0.0
    %730 = vmatprep.subr.mxu0 0.0
    %731 = vmatpush2.msra.mxu0 0.0
    %732 = vmatprep.subr.mxu0 0.0
    %733 = vmatpush2.msra.mxu0 0.0
    %734 = vmatprep.subr.mxu0 0.0
    %735 = vmatpush2.msra.mxu0 0.0
    %736 = vmatprep.subr.mxu0 0.0
    %737 = vmatpush2.msra.mxu0 0.0
    %738 = vmatprep.subr.mxu0 0.0
    %739 = vmatpush2.msra.mxu0 0.0
    %740 = vmatprep.subr.mxu0 0.0
    %741 = vmatpush2.msra.mxu0 0.0
    %742 = vmatprep.mubr.f32.mxu0 0.0
    %743 = vmatmul.mubr.f32.gmra.mxu0 %v87
    %v744 = vpop.f32.mrf.mxu0
    %v745 = vadd.f32 %v47, %v744
    %v746 = vpop.f32.mrf.mxu0
    %747 = vmatprep.mubr.f32.mxu0 0.0
    %748 = vmatmul.mubr.f32.gmra.mxu0 %v90
    %v749 = vpop.f32.mrf.mxu0
    %v750 = vadd.f32 %v52, %v749
    %v751 = vpop.f32.mrf.mxu0
    %752 = vmatprep.mubr.f32.mxu0 0.0
    %753 = vmatmul.mubr.f32.gmra.mxu0 %v93
    %v754 = vpop.f32.mrf.mxu0
    %v755 = vadd.f32 %v57, %v754
    %v756 = vpop.f32.mrf.mxu0
    %757 = vdwg.mxu0
    %758 = vmatprep.subr.mxu0 0.0
    %759 = vmatpush1.msra.mxu0 0.0
    %760 = vmatprep.subr.mxu0 0.0
    %761 = vmatpush1.msra.mxu0 0.0
    %762 = vmatprep.subr.mxu0 0.0
    %763 = vmatpush1.msra.mxu0 0.0
    %764 = vmatprep.subr.mxu0 0.0
    %765 = vmatpush1.msra.mxu0 0.0
    %766 = vmatprep.subr.mxu0 0.0
    %767 = vmatpush1.msra.mxu0 0.0
    %768 = vmatprep.subr.mxu0 0.0
    %769 = vmatpush1.msra.mxu0 0.0
    %770 = vmatprep.subr.mxu0 0.0
    %771 = vmatpush1.msra.mxu0 0.0
    %772 = vmatprep.subr.mxu0 0.0
    %773 = vmatpush1.msra.mxu0 0.0
    %774 = vmatprep.subr.mxu0 0.0
    %775 = vmatpush1.msra.mxu0 0.0
    %776 = vmatprep.subr.mxu0 0.0
    %777 = vmatpush1.msra.mxu0 0.0
    %778 = vmatprep.subr.mxu0 0.0
    %779 = vmatpush1.msra.mxu0 0.0
    %780 = vmatprep.subr.mxu0 0.0
    %781 = vmatpush1.msra.mxu0 0.0
    %782 = vmatprep.subr.mxu0 0.0
    %783 = vmatpush1.msra.mxu0 0.0
    %784 = vmatprep.subr.mxu0 0.0
    %785 = vmatpush1.msra.mxu0 0.0
    %786 = vmatprep.subr.mxu0 0.0
    %787 = vmatpush1.msra.mxu0 0.0
    %788 = vmatprep.subr.mxu0 0.0
    %789 = vmatpush1.msra.mxu0 %v668
    %790 = vmatprep.subr.mxu0 0.0
    %791 = vmatpush2.msra.mxu0 0.0
    %792 = vmatprep.subr.mxu0 0.0
    %793 = vmatpush2.msra.mxu0 0.0
    %794 = vmatprep.subr.mxu0 0.0
    %795 = vmatpush2.msra.mxu0 0.0
    %796 = vmatprep.subr.mxu0 0.0
    %797 = vmatpush2.msra.mxu0 0.0
    %798 = vmatprep.subr.mxu0 0.0
    %799 = vmatpush2.msra.mxu0 0.0
    %800 = vmatprep.subr.mxu0 0.0
    %801 = vmatpush2.msra.mxu0 0.0
    %802 = vmatprep.subr.mxu0 0.0
    %803 = vmatpush2.msra.mxu0 0.0
    %804 = vmatprep.subr.mxu0 0.0
    %805 = vmatpush2.msra.mxu0 0.0
    %806 = vmatprep.subr.mxu0 0.0
    %807 = vmatpush2.msra.mxu0 0.0
    %808 = vmatprep.subr.mxu0 0.0
    %809 = vmatpush2.msra.mxu0 0.0
    %810 = vmatprep.subr.mxu0 0.0
    %811 = vmatpush2.msra.mxu0 0.0
    %812 = vmatprep.subr.mxu0 0.0
    %813 = vmatpush2.msra.mxu0 0.0
    %814 = vmatprep.subr.mxu0 0.0
    %815 = vmatpush2.msra.mxu0 0.0
    %816 = vmatprep.subr.mxu0 0.0
    %817 = vmatpush2.msra.mxu0 0.0
    %818 = vmatprep.subr.mxu0 0.0
    %819 = vmatpush2.msra.mxu0 0.0
    %820 = vmatprep.subr.mxu0 0.0
    %821 = vmatpush2.msra.mxu0 0.0
    %822 = vmatprep.mubr.f32.mxu0 0.0
    %823 = vmatmul.mubr.f32.gmra.mxu0 %v177
    %v824 = vpop.f32.mrf.mxu0
    %v825 = vadd.f32 0.0, %v824
    %v826 = vpop.f32.mrf.mxu0
    %827 = vmatprep.mubr.f32.mxu0 0.0
    %828 = vmatmul.mubr.f32.gmra.mxu0 %v180
    %v829 = vpop.f32.mrf.mxu0
    %v830 = vadd.f32 0.0, %v829
    %v831 = vpop.f32.mrf.mxu0
    %832 = vmatprep.mubr.f32.mxu0 0.0
    %833 = vmatmul.mubr.f32.gmra.mxu0 %v183
    %v834 = vpop.f32.mrf.mxu0
    %v835 = vadd.f32 0.0, %v834
    %v836 = vpop.f32.mrf.mxu0
    %837 = vdwg.mxu0
    %v838 = vadd.f32 %v745, %v825
    %v839 = vxor.u32 %v838, 2147483648
    %v840 = vmul.f32 %v839, 1.442695
    %v841 = vpow.pop %v840
    %v842 = vadd.f32 %v841, 1.0
    %v843 = vrcp.pop %v842
    %v844 = vmul.f32 1.0, %v843
    %v845 = vadd.f32 %v750, %v830
    %v846 = vxor.u32 %v845, 2147483648
    %v847 = vmul.f32 %v846, 1.442695
    %v848 = vpow.pop %v847
    %v849 = vadd.f32 %v848, 1.0
    %v850 = vrcp.pop %v849
    %v851 = vmul.f32 1.0, %v850
    %v852 = vadd.f32 %v835, %v63
    %v853 = vmul.f32 %v844, %v852
    %v854 = vadd.f32 %v755, %v853
    %v855 = vtanh.pop %v854
    %v856 = vsub.f32 1.0, %v851
    %v857 = vmul.f32 %v856, %v855
    %v858 = vmul.f32 %v851, %v668
    %v859 = vadd.f32 %v857, %v858
    %s860 = scalar_lea.vmem [#allocation2], 256
    %v861 = vld [vmem:[%s860] sm:$0xff]
    %v862 = vld [vmem:[%s860 + $0x8] sm:$0xff]
    %v863 = vld [vmem:[%s860 + $0x10] sm:$0xff]
    %v864 = vld [vmem:[%s860 + $0x18] sm:$0xff]
    %v865 = vld [vmem:[%s860 + $0x20] sm:$0xff]
    %v866 = vld [vmem:[%s860 + $0x28] sm:$0xff]
    %v867 = vld [vmem:[%s860 + $0x30] sm:$0xff]
    %v868 = vld [vmem:[%s860 + $0x38] sm:$0xff]
    %869 = vmatprep.subr.mxu0 0.0
    %870 = vmatpush1.msra.mxu0 0.0
    %871 = vmatprep.subr.mxu0 0.0
    %872 = vmatpush1.msra.mxu0 0.0
    %873 = vmatprep.subr.mxu0 0.0
    %874 = vmatpush1.msra.mxu0 0.0
    %875 = vmatprep.subr.mxu0 0.0
    %876 = vmatpush1.msra.mxu0 0.0
    %877 = vmatprep.subr.mxu0 0.0
    %878 = vmatpush1.msra.mxu0 0.0
    %879 = vmatprep.subr.mxu0 0.0
    %880 = vmatpush1.msra.mxu0 0.0
    %881 = vmatprep.subr.mxu0 0.0
    %882 = vmatpush1.msra.mxu0 0.0
    %883 = vmatprep.subr.mxu0 0.0
    %884 = vmatpush1.msra.mxu0 0.0
    %885 = vmatprep.subr.mxu0 0.0
    %886 = vmatpush1.msra.mxu0 %v868
    %887 = vmatprep.subr.mxu0 0.0
    %888 = vmatpush1.msra.mxu0 %v867
    %889 = vmatprep.subr.mxu0 0.0
    %890 = vmatpush1.msra.mxu0 %v866
    %891 = vmatprep.subr.mxu0 0.0
    %892 = vmatpush1.msra.mxu0 %v865
    %893 = vmatprep.subr.mxu0 0.0
    %894 = vmatpush1.msra.mxu0 %v864
    %895 = vmatprep.subr.mxu0 0.0
    %896 = vmatpush1.msra.mxu0 %v863
    %897 = vmatprep.subr.mxu0 0.0
    %898 = vmatpush1.msra.mxu0 %v862
    %899 = vmatprep.subr.mxu0 0.0
    %900 = vmatpush1.msra.mxu0 %v861
    %901 = vmatprep.subr.mxu0 0.0
    %902 = vmatpush2.msra.mxu0 0.0
    %903 = vmatprep.subr.mxu0 0.0
    %904 = vmatpush2.msra.mxu0 0.0
    %905 = vmatprep.subr.mxu0 0.0
    %906 = vmatpush2.msra.mxu0 0.0
    %907 = vmatprep.subr.mxu0 0.0
    %908 = vmatpush2.msra.mxu0 0.0
    %909 = vmatprep.subr.mxu0 0.0
    %910 = vmatpush2.msra.mxu0 0.0
    %911 = vmatprep.subr.mxu0 0.0
    %912 = vmatpush2.msra.mxu0 0.0
    %913 = vmatprep.subr.mxu0 0.0
    %914 = vmatpush2.msra.mxu0 0.0
    %915 = vmatprep.subr.mxu0 0.0
    %916 = vmatpush2.msra.mxu0 0.0
    %917 = vmatprep.subr.mxu0 0.0
    %918 = vmatpush2.msra.mxu0 0.0
    %919 = vmatprep.subr.mxu0 0.0
    %920 = vmatpush2.msra.mxu0 0.0
    %921 = vmatprep.subr.mxu0 0.0
    %922 = vmatpush2.msra.mxu0 0.0
    %923 = vmatprep.subr.mxu0 0.0
    %924 = vmatpush2.msra.mxu0 0.0
    %925 = vmatprep.subr.mxu0 0.0
    %926 = vmatpush2.msra.mxu0 0.0
    %927 = vmatprep.subr.mxu0 0.0
    %928 = vmatpush2.msra.mxu0 0.0
    %929 = vmatprep.subr.mxu0 0.0
    %930 = vmatpush2.msra.mxu0 0.0
    %931 = vmatprep.subr.mxu0 0.0
    %932 = vmatpush2.msra.mxu0 0.0
    %933 = vmatprep.mubr.f32.mxu0 0.0
    %934 = vmatmul.mubr.f32.gmra.mxu0 %v87
    %v935 = vpop.f32.mrf.mxu0
    %v936 = vadd.f32 %v47, %v935
    %v937 = vpop.f32.mrf.mxu0
    %938 = vmatprep.mubr.f32.mxu0 0.0
    %939 = vmatmul.mubr.f32.gmra.mxu0 %v90
    %v940 = vpop.f32.mrf.mxu0
    %v941 = vadd.f32 %v52, %v940
    %v942 = vpop.f32.mrf.mxu0
    %943 = vmatprep.mubr.f32.mxu0 0.0
    %944 = vmatmul.mubr.f32.gmra.mxu0 %v93
    %v945 = vpop.f32.mrf.mxu0
    %v946 = vadd.f32 %v57, %v945
    %v947 = vpop.f32.mrf.mxu0
    %948 = vdwg.mxu0
    %949 = vmatprep.subr.mxu0 0.0
    %950 = vmatpush1.msra.mxu0 0.0
    %951 = vmatprep.subr.mxu0 0.0
    %952 = vmatpush1.msra.mxu0 0.0
    %953 = vmatprep.subr.mxu0 0.0
    %954 = vmatpush1.msra.mxu0 0.0
    %955 = vmatprep.subr.mxu0 0.0
    %956 = vmatpush1.msra.mxu0 0.0
    %957 = vmatprep.subr.mxu0 0.0
    %958 = vmatpush1.msra.mxu0 0.0
    %959 = vmatprep.subr.mxu0 0.0
    %960 = vmatpush1.msra.mxu0 0.0
    %961 = vmatprep.subr.mxu0 0.0
    %962 = vmatpush1.msra.mxu0 0.0
    %963 = vmatprep.subr.mxu0 0.0
    %964 = vmatpush1.msra.mxu0 0.0
    %965 = vmatprep.subr.mxu0 0.0
    %966 = vmatpush1.msra.mxu0 0.0
    %967 = vmatprep.subr.mxu0 0.0
    %968 = vmatpush1.msra.mxu0 0.0
    %969 = vmatprep.subr.mxu0 0.0
    %970 = vmatpush1.msra.mxu0 0.0
    %971 = vmatprep.subr.mxu0 0.0
    %972 = vmatpush1.msra.mxu0 0.0
    %973 = vmatprep.subr.mxu0 0.0
    %974 = vmatpush1.msra.mxu0 0.0
    %975 = vmatprep.subr.mxu0 0.0
    %976 = vmatpush1.msra.mxu0 0.0
    %977 = vmatprep.subr.mxu0 0.0
    %978 = vmatpush1.msra.mxu0 0.0
    %979 = vmatprep.subr.mxu0 0.0
    %980 = vmatpush1.msra.mxu0 %v859
    %981 = vmatprep.subr.mxu0 0.0
    %982 = vmatpush2.msra.mxu0 0.0
    %983 = vmatprep.subr.mxu0 0.0
    %984 = vmatpush2.msra.mxu0 0.0
    %985 = vmatprep.subr.mxu0 0.0
    %986 = vmatpush2.msra.mxu0 0.0
    %987 = vmatprep.subr.mxu0 0.0
    %988 = vmatpush2.msra.mxu0 0.0
    %989 = vmatprep.subr.mxu0 0.0
    %990 = vmatpush2.msra.mxu0 0.0
    %991 = vmatprep.subr.mxu0 0.0
    %992 = vmatpush2.msra.mxu0 0.0
    %993 = vmatprep.subr.mxu0 0.0
    %994 = vmatpush2.msra.mxu0 0.0
    %995 = vmatprep.subr.mxu0 0.0
    %996 = vmatpush2.msra.mxu0 0.0
    %997 = vmatprep.subr.mxu0 0.0
    %998 = vmatpush2.msra.mxu0 0.0
    %999 = vmatprep.subr.mxu0 0.0
    %1000 = vmatpush2.msra.mxu0 0.0
    %1001 = vmatprep.subr.mxu0 0.0
    %1002 = vmatpush2.msra.mxu0 0.0
    %1003 = vmatprep.subr.mxu0 0.0
    %1004 = vmatpush2.msra.mxu0 0.0
    %1005 = vmatprep.subr.mxu0 0.0
    %1006 = vmatpush2.msra.mxu0 0.0
    %1007 = vmatprep.subr.mxu0 0.0
    %1008 = vmatpush2.msra.mxu0 0.0
    %1009 = vmatprep.subr.mxu0 0.0
    %1010 = vmatpush2.msra.mxu0 0.0
    %1011 = vmatprep.subr.mxu0 0.0
    %1012 = vmatpush2.msra.mxu0 0.0
    %1013 = vmatprep.mubr.f32.mxu0 0.0
    %1014 = vmatmul.mubr.f32.gmra.mxu0 %v177
    %v1015 = vpop.f32.mrf.mxu0
    %v1016 = vadd.f32 0.0, %v1015
    %v1017 = vpop.f32.mrf.mxu0
    %1018 = vmatprep.mubr.f32.mxu0 0.0
    %1019 = vmatmul.mubr.f32.gmra.mxu0 %v180
    %v1020 = vpop.f32.mrf.mxu0
    %v1021 = vadd.f32 0.0, %v1020
    %v1022 = vpop.f32.mrf.mxu0
    %1023 = vmatprep.mubr.f32.mxu0 0.0
    %1024 = vmatmul.mubr.f32.gmra.mxu0 %v183
    %v1025 = vpop.f32.mrf.mxu0
    %v1026 = vadd.f32 0.0, %v1025
    %v1027 = vpop.f32.mrf.mxu0
    %1028 = vdwg.mxu0
    %v1029 = vadd.f32 %v936, %v1016
    %v1030 = vxor.u32 %v1029, 2147483648
    %v1031 = vmul.f32 %v1030, 1.442695
    %v1032 = vpow.pop %v1031
    %v1033 = vadd.f32 %v1032, 1.0
    %v1034 = vrcp.pop %v1033
    %v1035 = vmul.f32 1.0, %v1034
    %v1036 = vadd.f32 %v941, %v1021
    %v1037 = vxor.u32 %v1036, 2147483648
    %v1038 = vmul.f32 %v1037, 1.442695
    %v1039 = vpow.pop %v1038
    %v1040 = vadd.f32 %v1039, 1.0
    %v1041 = vrcp.pop %v1040
    %v1042 = vmul.f32 1.0, %v1041
    %v1043 = vadd.f32 %v1026, %v63
    %v1044 = vmul.f32 %v1035, %v1043
    %v1045 = vadd.f32 %v946, %v1044
    %v1046 = vtanh.pop %v1045
    %v1047 = vsub.f32 1.0, %v1042
    %v1048 = vmul.f32 %v1047, %v1046
    %v1049 = vmul.f32 %v1042, %v859
    %v1050 = vadd.f32 %v1048, %v1049
    %s1051 = scalar_lea.vmem [#allocation2], 320
    %v1052 = vld [vmem:[%s1051] sm:$0xff]
    %v1053 = vld [vmem:[%s1051 + $0x8] sm:$0xff]
    %v1054 = vld [vmem:[%s1051 + $0x10] sm:$0xff]
    %v1055 = vld [vmem:[%s1051 + $0x18] sm:$0xff]
    %v1056 = vld [vmem:[%s1051 + $0x20] sm:$0xff]
    %v1057 = vld [vmem:[%s1051 + $0x28] sm:$0xff]
    %v1058 = vld [vmem:[%s1051 + $0x30] sm:$0xff]
    %v1059 = vld [vmem:[%s1051 + $0x38] sm:$0xff]
    %1060 = vmatprep.subr.mxu0 0.0
    %1061 = vmatpush1.msra.mxu0 0.0
    %1062 = vmatprep.subr.mxu0 0.0
    %1063 = vmatpush1.msra.mxu0 0.0
    %1064 = vmatprep.subr.mxu0 0.0
    %1065 = vmatpush1.msra.mxu0 0.0
    %1066 = vmatprep.subr.mxu0 0.0
    %1067 = vmatpush1.msra.mxu0 0.0
    %1068 = vmatprep.subr.mxu0 0.0
    %1069 = vmatpush1.msra.mxu0 0.0
    %1070 = vmatprep.subr.mxu0 0.0
    %1071 = vmatpush1.msra.mxu0 0.0
    %1072 = vmatprep.subr.mxu0 0.0
    %1073 = vmatpush1.msra.mxu0 0.0
    %1074 = vmatprep.subr.mxu0 0.0
    %1075 = vmatpush1.msra.mxu0 0.0
    %1076 = vmatprep.subr.mxu0 0.0
    %1077 = vmatpush1.msra.mxu0 %v1059
    %1078 = vmatprep.subr.mxu0 0.0
    %1079 = vmatpush1.msra.mxu0 %v1058
    %1080 = vmatprep.subr.mxu0 0.0
    %1081 = vmatpush1.msra.mxu0 %v1057
    %1082 = vmatprep.subr.mxu0 0.0
    %1083 = vmatpush1.msra.mxu0 %v1056
    %1084 = vmatprep.subr.mxu0 0.0
    %1085 = vmatpush1.msra.mxu0 %v1055
    %1086 = vmatprep.subr.mxu0 0.0
    %1087 = vmatpush1.msra.mxu0 %v1054
    %1088 = vmatprep.subr.mxu0 0.0
    %1089 = vmatpush1.msra.mxu0 %v1053
    %1090 = vmatprep.subr.mxu0 0.0
    %1091 = vmatpush1.msra.mxu0 %v1052
    %1092 = vmatprep.subr.mxu0 0.0
    %1093 = vmatpush2.msra.mxu0 0.0
    %1094 = vmatprep.subr.mxu0 0.0
    %1095 = vmatpush2.msra.mxu0 0.0
    %1096 = vmatprep.subr.mxu0 0.0
    %1097 = vmatpush2.msra.mxu0 0.0
    %1098 = vmatprep.subr.mxu0 0.0
    %1099 = vmatpush2.msra.mxu0 0.0
    %1100 = vmatprep.subr.mxu0 0.0
    %1101 = vmatpush2.msra.mxu0 0.0
    %1102 = vmatprep.subr.mxu0 0.0
    %1103 = vmatpush2.msra.mxu0 0.0
    %1104 = vmatprep.subr.mxu0 0.0
    %1105 = vmatpush2.msra.mxu0 0.0
    %1106 = vmatprep.subr.mxu0 0.0
    %1107 = vmatpush2.msra.mxu0 0.0
    %1108 = vmatprep.subr.mxu0 0.0
    %1109 = vmatpush2.msra.mxu0 0.0
    %1110 = vmatprep.subr.mxu0 0.0
    %1111 = vmatpush2.msra.mxu0 0.0
    %1112 = vmatprep.subr.mxu0 0.0
    %1113 = vmatpush2.msra.mxu0 0.0
    %1114 = vmatprep.subr.mxu0 0.0
    %1115 = vmatpush2.msra.mxu0 0.0
    %1116 = vmatprep.subr.mxu0 0.0
    %1117 = vmatpush2.msra.mxu0 0.0
    %1118 = vmatprep.subr.mxu0 0.0
    %1119 = vmatpush2.msra.mxu0 0.0
    %1120 = vmatprep.subr.mxu0 0.0
    %1121 = vmatpush2.msra.mxu0 0.0
    %1122 = vmatprep.subr.mxu0 0.0
    %1123 = vmatpush2.msra.mxu0 0.0
    %1124 = vmatprep.mubr.f32.mxu0 0.0
    %1125 = vmatmul.mubr.f32.gmra.mxu0 %v87
    %v1126 = vpop.f32.mrf.mxu0
    %v1127 = vadd.f32 %v47, %v1126
    %v1128 = vpop.f32.mrf.mxu0
    %1129 = vmatprep.mubr.f32.mxu0 0.0
    %1130 = vmatmul.mubr.f32.gmra.mxu0 %v90
    %v1131 = vpop.f32.mrf.mxu0
    %v1132 = vadd.f32 %v52, %v1131
    %v1133 = vpop.f32.mrf.mxu0
    %1134 = vmatprep.mubr.f32.mxu0 0.0
    %1135 = vmatmul.mubr.f32.gmra.mxu0 %v93
    %v1136 = vpop.f32.mrf.mxu0
    %v1137 = vadd.f32 %v57, %v1136
    %v1138 = vpop.f32.mrf.mxu0
    %1139 = vdwg.mxu0
    %1140 = vmatprep.subr.mxu0 0.0
    %1141 = vmatpush1.msra.mxu0 0.0
    %1142 = vmatprep.subr.mxu0 0.0
    %1143 = vmatpush1.msra.mxu0 0.0
    %1144 = vmatprep.subr.mxu0 0.0
    %1145 = vmatpush1.msra.mxu0 0.0
    %1146 = vmatprep.subr.mxu0 0.0
    %1147 = vmatpush1.msra.mxu0 0.0
    %1148 = vmatprep.subr.mxu0 0.0
    %1149 = vmatpush1.msra.mxu0 0.0
    %1150 = vmatprep.subr.mxu0 0.0
    %1151 = vmatpush1.msra.mxu0 0.0
    %1152 = vmatprep.subr.mxu0 0.0
    %1153 = vmatpush1.msra.mxu0 0.0
    %1154 = vmatprep.subr.mxu0 0.0
    %1155 = vmatpush1.msra.mxu0 0.0
    %1156 = vmatprep.subr.mxu0 0.0
    %1157 = vmatpush1.msra.mxu0 0.0
    %1158 = vmatprep.subr.mxu0 0.0
    %1159 = vmatpush1.msra.mxu0 0.0
    %1160 = vmatprep.subr.mxu0 0.0
    %1161 = vmatpush1.msra.mxu0 0.0
    %1162 = vmatprep.subr.mxu0 0.0
    %1163 = vmatpush1.msra.mxu0 0.0
    %1164 = vmatprep.subr.mxu0 0.0
    %1165 = vmatpush1.msra.mxu0 0.0
    %1166 = vmatprep.subr.mxu0 0.0
    %1167 = vmatpush1.msra.mxu0 0.0
    %1168 = vmatprep.subr.mxu0 0.0
    %1169 = vmatpush1.msra.mxu0 0.0
    %1170 = vmatprep.subr.mxu0 0.0
    %1171 = vmatpush1.msra.mxu0 %v1050
    %1172 = vmatprep.subr.mxu0 0.0
    %1173 = vmatpush2.msra.mxu0 0.0
    %1174 = vmatprep.subr.mxu0 0.0
    %1175 = vmatpush2.msra.mxu0 0.0
    %1176 = vmatprep.subr.mxu0 0.0
    %1177 = vmatpush2.msra.mxu0 0.0
    %1178 = vmatprep.subr.mxu0 0.0
    %1179 = vmatpush2.msra.mxu0 0.0
    %1180 = vmatprep.subr.mxu0 0.0
    %1181 = vmatpush2.msra.mxu0 0.0
    %1182 = vmatprep.subr.mxu0 0.0
    %1183 = vmatpush2.msra.mxu0 0.0
    %1184 = vmatprep.subr.mxu0 0.0
    %1185 = vmatpush2.msra.mxu0 0.0
    %1186 = vmatprep.subr.mxu0 0.0
    %1187 = vmatpush2.msra.mxu0 0.0
    %1188 = vmatprep.subr.mxu0 0.0
    %1189 = vmatpush2.msra.mxu0 0.0
    %1190 = vmatprep.subr.mxu0 0.0
    %1191 = vmatpush2.msra.mxu0 0.0
    %1192 = vmatprep.subr.mxu0 0.0
    %1193 = vmatpush2.msra.mxu0 0.0
    %1194 = vmatprep.subr.mxu0 0.0
    %1195 = vmatpush2.msra.mxu0 0.0
    %1196 = vmatprep.subr.mxu0 0.0
    %1197 = vmatpush2.msra.mxu0 0.0
    %1198 = vmatprep.subr.mxu0 0.0
    %1199 = vmatpush2.msra.mxu0 0.0
    %1200 = vmatprep.subr.mxu0 0.0
    %1201 = vmatpush2.msra.mxu0 0.0
    %1202 = vmatprep.subr.mxu0 0.0
    %1203 = vmatpush2.msra.mxu0 0.0
    %1204 = vmatprep.mubr.f32.mxu0 0.0
    %1205 = vmatmul.mubr.f32.gmra.mxu0 %v177
    %v1206 = vpop.f32.mrf.mxu0
    %v1207 = vadd.f32 0.0, %v1206
    %v1208 = vpop.f32.mrf.mxu0
    %1209 = vmatprep.mubr.f32.mxu0 0.0
    %1210 = vmatmul.mubr.f32.gmra.mxu0 %v180
    %v1211 = vpop.f32.mrf.mxu0
    %v1212 = vadd.f32 0.0, %v1211
    %v1213 = vpop.f32.mrf.mxu0
    %1214 = vmatprep.mubr.f32.mxu0 0.0
    %1215 = vmatmul.mubr.f32.gmra.mxu0 %v183
    %v1216 = vpop.f32.mrf.mxu0
    %v1217 = vadd.f32 0.0, %v1216
    %v1218 = vpop.f32.mrf.mxu0
    %1219 = vdwg.mxu0
    %v1220 = vadd.f32 %v1127, %v1207
    %v1221 = vxor.u32 %v1220, 2147483648
    %v1222 = vmul.f32 %v1221, 1.442695
    %v1223 = vpow.pop %v1222
    %v1224 = vadd.f32 %v1223, 1.0
    %v1225 = vrcp.pop %v1224
    %v1226 = vmul.f32 1.0, %v1225
    %v1227 = vadd.f32 %v1132, %v1212
    %v1228 = vxor.u32 %v1227, 2147483648
    %v1229 = vmul.f32 %v1228, 1.442695
    %v1230 = vpow.pop %v1229
    %v1231 = vadd.f32 %v1230, 1.0
    %v1232 = vrcp.pop %v1231
    %v1233 = vmul.f32 1.0, %v1232
    %v1234 = vadd.f32 %v1217, %v63
    %v1235 = vmul.f32 %v1226, %v1234
    %v1236 = vadd.f32 %v1137, %v1235
    %v1237 = vtanh.pop %v1236
    %v1238 = vsub.f32 1.0, %v1233
    %v1239 = vmul.f32 %v1238, %v1237
    %v1240 = vmul.f32 %v1233, %v1050
    %v1241 = vadd.f32 %v1239, %v1240
    %s1242 = scalar_lea.vmem [#allocation2], 384
    %v1243 = vld [vmem:[%s1242] sm:$0xff]
    %v1244 = vld [vmem:[%s1242 + $0x8] sm:$0xff]
    %v1245 = vld [vmem:[%s1242 + $0x10] sm:$0xff]
    %v1246 = vld [vmem:[%s1242 + $0x18] sm:$0xff]
    %v1247 = vld [vmem:[%s1242 + $0x20] sm:$0xff]
    %v1248 = vld [vmem:[%s1242 + $0x28] sm:$0xff]
    %v1249 = vld [vmem:[%s1242 + $0x30] sm:$0xff]
    %v1250 = vld [vmem:[%s1242 + $0x38] sm:$0xff]
    %1251 = vmatprep.subr.mxu0 0.0
    %1252 = vmatpush1.msra.mxu0 0.0
    %1253 = vmatprep.subr.mxu0 0.0
    %1254 = vmatpush1.msra.mxu0 0.0
    %1255 = vmatprep.subr.mxu0 0.0
    %1256 = vmatpush1.msra.mxu0 0.0
    %1257 = vmatprep.subr.mxu0 0.0
    %1258 = vmatpush1.msra.mxu0 0.0
    %1259 = vmatprep.subr.mxu0 0.0
    %1260 = vmatpush1.msra.mxu0 0.0
    %1261 = vmatprep.subr.mxu0 0.0
    %1262 = vmatpush1.msra.mxu0 0.0
    %1263 = vmatprep.subr.mxu0 0.0
    %1264 = vmatpush1.msra.mxu0 0.0
    %1265 = vmatprep.subr.mxu0 0.0
    %1266 = vmatpush1.msra.mxu0 0.0
    %1267 = vmatprep.subr.mxu0 0.0
    %1268 = vmatpush1.msra.mxu0 %v1250
    %1269 = vmatprep.subr.mxu0 0.0
    %1270 = vmatpush1.msra.mxu0 %v1249
    %1271 = vmatprep.subr.mxu0 0.0
    %1272 = vmatpush1.msra.mxu0 %v1248
    %1273 = vmatprep.subr.mxu0 0.0
    %1274 = vmatpush1.msra.mxu0 %v1247
    %1275 = vmatprep.subr.mxu0 0.0
    %1276 = vmatpush1.msra.mxu0 %v1246
    %1277 = vmatprep.subr.mxu0 0.0
    %1278 = vmatpush1.msra.mxu0 %v1245
    %1279 = vmatprep.subr.mxu0 0.0
    %1280 = vmatpush1.msra.mxu0 %v1244
    %1281 = vmatprep.subr.mxu0 0.0
    %1282 = vmatpush1.msra.mxu0 %v1243
    %1283 = vmatprep.subr.mxu0 0.0
    %1284 = vmatpush2.msra.mxu0 0.0
    %1285 = vmatprep.subr.mxu0 0.0
    %1286 = vmatpush2.msra.mxu0 0.0
    %1287 = vmatprep.subr.mxu0 0.0
    %1288 = vmatpush2.msra.mxu0 0.0
    %1289 = vmatprep.subr.mxu0 0.0
    %1290 = vmatpush2.msra.mxu0 0.0
    %1291 = vmatprep.subr.mxu0 0.0
    %1292 = vmatpush2.msra.mxu0 0.0
    %1293 = vmatprep.subr.mxu0 0.0
    %1294 = vmatpush2.msra.mxu0 0.0
    %1295 = vmatprep.subr.mxu0 0.0
    %1296 = vmatpush2.msra.mxu0 0.0
    %1297 = vmatprep.subr.mxu0 0.0
    %1298 = vmatpush2.msra.mxu0 0.0
    %1299 = vmatprep.subr.mxu0 0.0
    %1300 = vmatpush2.msra.mxu0 0.0
    %1301 = vmatprep.subr.mxu0 0.0
    %1302 = vmatpush2.msra.mxu0 0.0
    %1303 = vmatprep.subr.mxu0 0.0
    %1304 = vmatpush2.msra.mxu0 0.0
    %1305 = vmatprep.subr.mxu0 0.0
    %1306 = vmatpush2.msra.mxu0 0.0
    %1307 = vmatprep.subr.mxu0 0.0
    %1308 = vmatpush2.msra.mxu0 0.0
    %1309 = vmatprep.subr.mxu0 0.0
    %1310 = vmatpush2.msra.mxu0 0.0
    %1311 = vmatprep.subr.mxu0 0.0
    %1312 = vmatpush2.msra.mxu0 0.0
    %1313 = vmatprep.subr.mxu0 0.0
    %1314 = vmatpush2.msra.mxu0 0.0
    %1315 = vmatprep.mubr.f32.mxu0 0.0
    %1316 = vmatmul.mubr.f32.gmra.mxu0 %v87
    %v1317 = vpop.f32.mrf.mxu0
    %v1318 = vadd.f32 %v47, %v1317
    %v1319 = vpop.f32.mrf.mxu0
    %1320 = vmatprep.mubr.f32.mxu0 0.0
    %1321 = vmatmul.mubr.f32.gmra.mxu0 %v90
    %v1322 = vpop.f32.mrf.mxu0
    %v1323 = vadd.f32 %v52, %v1322
    %v1324 = vpop.f32.mrf.mxu0
    %1325 = vmatprep.mubr.f32.mxu0 0.0
    %1326 = vmatmul.mubr.f32.gmra.mxu0 %v93
    %v1327 = vpop.f32.mrf.mxu0
    %v1328 = vadd.f32 %v57, %v1327
    %v1329 = vpop.f32.mrf.mxu0
    %1330 = vdwg.mxu0
    %1331 = vmatprep.subr.mxu0 0.0
    %1332 = vmatpush1.msra.mxu0 0.0
    %1333 = vmatprep.subr.mxu0 0.0
    %1334 = vmatpush1.msra.mxu0 0.0
    %1335 = vmatprep.subr.mxu0 0.0
    %1336 = vmatpush1.msra.mxu0 0.0
    %1337 = vmatprep.subr.mxu0 0.0
    %1338 = vmatpush1.msra.mxu0 0.0
    %1339 = vmatprep.subr.mxu0 0.0
    %1340 = vmatpush1.msra.mxu0 0.0
    %1341 = vmatprep.subr.mxu0 0.0
    %1342 = vmatpush1.msra.mxu0 0.0
    %1343 = vmatprep.subr.mxu0 0.0
    %1344 = vmatpush1.msra.mxu0 0.0
    %1345 = vmatprep.subr.mxu0 0.0
    %1346 = vmatpush1.msra.mxu0 0.0
    %1347 = vmatprep.subr.mxu0 0.0
    %1348 = vmatpush1.msra.mxu0 0.0
    %1349 = vmatprep.subr.mxu0 0.0
    %1350 = vmatpush1.msra.mxu0 0.0
    %1351 = vmatprep.subr.mxu0 0.0
    %1352 = vmatpush1.msra.mxu0 0.0
    %1353 = vmatprep.subr.mxu0 0.0
    %1354 = vmatpush1.msra.mxu0 0.0
    %1355 = vmatprep.subr.mxu0 0.0
    %1356 = vmatpush1.msra.mxu0 0.0
    %1357 = vmatprep.subr.mxu0 0.0
    %1358 = vmatpush1.msra.mxu0 0.0
    %1359 = vmatprep.subr.mxu0 0.0
    %1360 = vmatpush1.msra.mxu0 0.0
    %1361 = vmatprep.subr.mxu0 0.0
    %1362 = vmatpush1.msra.mxu0 %v1241
    %1363 = vmatprep.subr.mxu0 0.0
    %1364 = vmatpush2.msra.mxu0 0.0
    %1365 = vmatprep.subr.mxu0 0.0
    %1366 = vmatpush2.msra.mxu0 0.0
    %1367 = vmatprep.subr.mxu0 0.0
    %1368 = vmatpush2.msra.mxu0 0.0
    %1369 = vmatprep.subr.mxu0 0.0
    %1370 = vmatpush2.msra.mxu0 0.0
    %1371 = vmatprep.subr.mxu0 0.0
    %1372 = vmatpush2.msra.mxu0 0.0
    %1373 = vmatprep.subr.mxu0 0.0
    %1374 = vmatpush2.msra.mxu0 0.0
    %1375 = vmatprep.subr.mxu0 0.0
    %1376 = vmatpush2.msra.mxu0 0.0
    %1377 = vmatprep.subr.mxu0 0.0
    %1378 = vmatpush2.msra.mxu0 0.0
    %1379 = vmatprep.subr.mxu0 0.0
    %1380 = vmatpush2.msra.mxu0 0.0
    %1381 = vmatprep.subr.mxu0 0.0
    %1382 = vmatpush2.msra.mxu0 0.0
    %1383 = vmatprep.subr.mxu0 0.0
    %1384 = vmatpush2.msra.mxu0 0.0
    %1385 = vmatprep.subr.mxu0 0.0
    %1386 = vmatpush2.msra.mxu0 0.0
    %1387 = vmatprep.subr.mxu0 0.0
    %1388 = vmatpush2.msra.mxu0 0.0
    %1389 = vmatprep.subr.mxu0 0.0
    %1390 = vmatpush2.msra.mxu0 0.0
    %1391 = vmatprep.subr.mxu0 0.0
    %1392 = vmatpush2.msra.mxu0 0.0
    %1393 = vmatprep.subr.mxu0 0.0
    %1394 = vmatpush2.msra.mxu0 0.0
    %1395 = vmatprep.mubr.f32.mxu0 0.0
    %1396 = vmatmul.mubr.f32.gmra.mxu0 %v177
    %v1397 = vpop.f32.mrf.mxu0
    %v1398 = vadd.f32 0.0, %v1397
    %v1399 = vpop.f32.mrf.mxu0
    %1400 = vmatprep.mubr.f32.mxu0 0.0
    %1401 = vmatmul.mubr.f32.gmra.mxu0 %v180
    %v1402 = vpop.f32.mrf.mxu0
    %v1403 = vadd.f32 0.0, %v1402
    %v1404 = vpop.f32.mrf.mxu0
    %1405 = vmatprep.mubr.f32.mxu0 0.0
    %1406 = vmatmul.mubr.f32.gmra.mxu0 %v183
    %v1407 = vpop.f32.mrf.mxu0
    %v1408 = vadd.f32 0.0, %v1407
    %v1409 = vpop.f32.mrf.mxu0
    %1410 = vdwg.mxu0
    %v1411 = vadd.f32 %v1318, %v1398
    %v1412 = vxor.u32 %v1411, 2147483648
    %v1413 = vmul.f32 %v1412, 1.442695
    %v1414 = vpow.pop %v1413
    %v1415 = vadd.f32 %v1414, 1.0
    %v1416 = vrcp.pop %v1415
    %v1417 = vmul.f32 1.0, %v1416
    %v1418 = vadd.f32 %v1323, %v1403
    %v1419 = vxor.u32 %v1418, 2147483648
    %v1420 = vmul.f32 %v1419, 1.442695
    %v1421 = vpow.pop %v1420
    %v1422 = vadd.f32 %v1421, 1.0
    %v1423 = vrcp.pop %v1422
    %v1424 = vmul.f32 1.0, %v1423
    %v1425 = vadd.f32 %v1408, %v63
    %v1426 = vmul.f32 %v1417, %v1425
    %v1427 = vadd.f32 %v1328, %v1426
    %v1428 = vtanh.pop %v1427
    %v1429 = vsub.f32 1.0, %v1424
    %v1430 = vmul.f32 %v1429, %v1428
    %v1431 = vmul.f32 %v1424, %v1241
    %v1432 = vadd.f32 %v1430, %v1431
    %s1433 = scalar_lea.vmem [#allocation2], 448
    %v1434 = vld [vmem:[%s1433] sm:$0xff]
    %v1435 = vld [vmem:[%s1433 + $0x8] sm:$0xff]
    %v1436 = vld [vmem:[%s1433 + $0x10] sm:$0xff]
    %v1437 = vld [vmem:[%s1433 + $0x18] sm:$0xff]
    %v1438 = vld [vmem:[%s1433 + $0x20] sm:$0xff]
    %v1439 = vld [vmem:[%s1433 + $0x28] sm:$0xff]
    %v1440 = vld [vmem:[%s1433 + $0x30] sm:$0xff]
    %v1441 = vld [vmem:[%s1433 + $0x38] sm:$0xff]
    %1442 = vmatprep.subr.mxu0 0.0
    %1443 = vmatpush1.msra.mxu0 0.0
    %1444 = vmatprep.subr.mxu0 0.0
    %1445 = vmatpush1.msra.mxu0 0.0
    %1446 = vmatprep.subr.mxu0 0.0
    %1447 = vmatpush1.msra.mxu0 0.0
    %1448 = vmatprep.subr.mxu0 0.0
    %1449 = vmatpush1.msra.mxu0 0.0
    %1450 = vmatprep.subr.mxu0 0.0
    %1451 = vmatpush1.msra.mxu0 0.0
    %1452 = vmatprep.subr.mxu0 0.0
    %1453 = vmatpush1.msra.mxu0 0.0
    %1454 = vmatprep.subr.mxu0 0.0
    %1455 = vmatpush1.msra.mxu0 0.0
    %1456 = vmatprep.subr.mxu0 0.0
    %1457 = vmatpush1.msra.mxu0 0.0
    %1458 = vmatprep.subr.mxu0 0.0
    %1459 = vmatpush1.msra.mxu0 %v1441
    %1460 = vmatprep.subr.mxu0 0.0
    %1461 = vmatpush1.msra.mxu0 %v1440
    %1462 = vmatprep.subr.mxu0 0.0
    %1463 = vmatpush1.msra.mxu0 %v1439
    %1464 = vmatprep.subr.mxu0 0.0
    %1465 = vmatpush1.msra.mxu0 %v1438
    %1466 = vmatprep.subr.mxu0 0.0
    %1467 = vmatpush1.msra.mxu0 %v1437
    %1468 = vmatprep.subr.mxu0 0.0
    %1469 = vmatpush1.msra.mxu0 %v1436
    %1470 = vmatprep.subr.mxu0 0.0
    %1471 = vmatpush1.msra.mxu0 %v1435
    %1472 = vmatprep.subr.mxu0 0.0
    %1473 = vmatpush1.msra.mxu0 %v1434
    %1474 = vmatprep.subr.mxu0 0.0
    %1475 = vmatpush2.msra.mxu0 0.0
    %1476 = vmatprep.subr.mxu0 0.0
    %1477 = vmatpush2.msra.mxu0 0.0
    %1478 = vmatprep.subr.mxu0 0.0
    %1479 = vmatpush2.msra.mxu0 0.0
    %1480 = vmatprep.subr.mxu0 0.0
    %1481 = vmatpush2.msra.mxu0 0.0
    %1482 = vmatprep.subr.mxu0 0.0
    %1483 = vmatpush2.msra.mxu0 0.0
    %1484 = vmatprep.subr.mxu0 0.0
    %1485 = vmatpush2.msra.mxu0 0.0
    %1486 = vmatprep.subr.mxu0 0.0
    %1487 = vmatpush2.msra.mxu0 0.0
    %1488 = vmatprep.subr.mxu0 0.0
    %1489 = vmatpush2.msra.mxu0 0.0
    %1490 = vmatprep.subr.mxu0 0.0
    %1491 = vmatpush2.msra.mxu0 0.0
    %1492 = vmatprep.subr.mxu0 0.0
    %1493 = vmatpush2.msra.mxu0 0.0
    %1494 = vmatprep.subr.mxu0 0.0
    %1495 = vmatpush2.msra.mxu0 0.0
    %1496 = vmatprep.subr.mxu0 0.0
    %1497 = vmatpush2.msra.mxu0 0.0
    %1498 = vmatprep.subr.mxu0 0.0
    %1499 = vmatpush2.msra.mxu0 0.0
    %1500 = vmatprep.subr.mxu0 0.0
    %1501 = vmatpush2.msra.mxu0 0.0
    %1502 = vmatprep.subr.mxu0 0.0
    %1503 = vmatpush2.msra.mxu0 0.0
    %1504 = vmatprep.subr.mxu0 0.0
    %1505 = vmatpush2.msra.mxu0 0.0
    %1506 = vmatprep.mubr.f32.mxu0 0.0
    %1507 = vmatmul.mubr.f32.gmra.mxu0 %v87
    %v1508 = vpop.f32.mrf.mxu0
    %v1509 = vadd.f32 %v47, %v1508
    %v1510 = vpop.f32.mrf.mxu0
    %1511 = vmatprep.mubr.f32.mxu0 0.0
    %1512 = vmatmul.mubr.f32.gmra.mxu0 %v90
    %v1513 = vpop.f32.mrf.mxu0
    %v1514 = vadd.f32 %v52, %v1513
    %v1515 = vpop.f32.mrf.mxu0
    %1516 = vmatprep.mubr.f32.mxu0 0.0
    %1517 = vmatmul.mubr.f32.gmra.mxu0 %v93
    %v1518 = vpop.f32.mrf.mxu0
    %v1519 = vadd.f32 %v57, %v1518
    %v1520 = vpop.f32.mrf.mxu0
    %1521 = vdwg.mxu0
    %1522 = vmatprep.subr.mxu0 0.0
    %1523 = vmatpush1.msra.mxu0 0.0
    %1524 = vmatprep.subr.mxu0 0.0
    %1525 = vmatpush1.msra.mxu0 0.0
    %1526 = vmatprep.subr.mxu0 0.0
    %1527 = vmatpush1.msra.mxu0 0.0
    %1528 = vmatprep.subr.mxu0 0.0
    %1529 = vmatpush1.msra.mxu0 0.0
    %1530 = vmatprep.subr.mxu0 0.0
    %1531 = vmatpush1.msra.mxu0 0.0
    %1532 = vmatprep.subr.mxu0 0.0
    %1533 = vmatpush1.msra.mxu0 0.0
    %1534 = vmatprep.subr.mxu0 0.0
    %1535 = vmatpush1.msra.mxu0 0.0
    %1536 = vmatprep.subr.mxu0 0.0
    %1537 = vmatpush1.msra.mxu0 0.0
    %1538 = vmatprep.subr.mxu0 0.0
    %1539 = vmatpush1.msra.mxu0 0.0
    %1540 = vmatprep.subr.mxu0 0.0
    %1541 = vmatpush1.msra.mxu0 0.0
    %1542 = vmatprep.subr.mxu0 0.0
    %1543 = vmatpush1.msra.mxu0 0.0
    %1544 = vmatprep.subr.mxu0 0.0
    %1545 = vmatpush1.msra.mxu0 0.0
    %1546 = vmatprep.subr.mxu0 0.0
    %1547 = vmatpush1.msra.mxu0 0.0
    %1548 = vmatprep.subr.mxu0 0.0
    %1549 = vmatpush1.msra.mxu0 0.0
    %1550 = vmatprep.subr.mxu0 0.0
    %1551 = vmatpush1.msra.mxu0 0.0
    %1552 = vmatprep.subr.mxu0 0.0
    %1553 = vmatpush1.msra.mxu0 %v1432
    %1554 = vmatprep.subr.mxu0 0.0
    %1555 = vmatpush2.msra.mxu0 0.0
    %1556 = vmatprep.subr.mxu0 0.0
    %1557 = vmatpush2.msra.mxu0 0.0
    %1558 = vmatprep.subr.mxu0 0.0
    %1559 = vmatpush2.msra.mxu0 0.0
    %1560 = vmatprep.subr.mxu0 0.0
    %1561 = vmatpush2.msra.mxu0 0.0
    %1562 = vmatprep.subr.mxu0 0.0
    %1563 = vmatpush2.msra.mxu0 0.0
    %1564 = vmatprep.subr.mxu0 0.0
    %1565 = vmatpush2.msra.mxu0 0.0
    %1566 = vmatprep.subr.mxu0 0.0
    %1567 = vmatpush2.msra.mxu0 0.0
    %1568 = vmatprep.subr.mxu0 0.0
    %1569 = vmatpush2.msra.mxu0 0.0
    %1570 = vmatprep.subr.mxu0 0.0
    %1571 = vmatpush2.msra.mxu0 0.0
    %1572 = vmatprep.subr.mxu0 0.0
    %1573 = vmatpush2.msra.mxu0 0.0
    %1574 = vmatprep.subr.mxu0 0.0
    %1575 = vmatpush2.msra.mxu0 0.0
    %1576 = vmatprep.subr.mxu0 0.0
    %1577 = vmatpush2.msra.mxu0 0.0
    %1578 = vmatprep.subr.mxu0 0.0
    %1579 = vmatpush2.msra.mxu0 0.0
    %1580 = vmatprep.subr.mxu0 0.0
    %1581 = vmatpush2.msra.mxu0 0.0
    %1582 = vmatprep.subr.mxu0 0.0
    %1583 = vmatpush2.msra.mxu0 0.0
    %1584 = vmatprep.subr.mxu0 0.0
    %1585 = vmatpush2.msra.mxu0 0.0
    %1586 = vmatprep.mubr.f32.mxu0 0.0
    %1587 = vmatmul.mubr.f32.gmra.mxu0 %v177
    %v1588 = vpop.f32.mrf.mxu0
    %v1589 = vadd.f32 0.0, %v1588
    %v1590 = vpop.f32.mrf.mxu0
    %1591 = vmatprep.mubr.f32.mxu0 0.0
    %1592 = vmatmul.mubr.f32.gmra.mxu0 %v180
    %v1593 = vpop.f32.mrf.mxu0
    %v1594 = vadd.f32 0.0, %v1593
    %v1595 = vpop.f32.mrf.mxu0
    %1596 = vmatprep.mubr.f32.mxu0 0.0
    %1597 = vmatmul.mubr.f32.gmra.mxu0 %v183
    %v1598 = vpop.f32.mrf.mxu0
    %v1599 = vadd.f32 0.0, %v1598
    %v1600 = vpop.f32.mrf.mxu0
    %1601 = vdwg.mxu0
    %v1602 = vadd.f32 %v1509, %v1589
    %v1603 = vxor.u32 %v1602, 2147483648
    %v1604 = vmul.f32 %v1603, 1.442695
    %v1605 = vpow.pop %v1604
    %v1606 = vadd.f32 %v1605, 1.0
    %v1607 = vrcp.pop %v1606
    %v1608 = vmul.f32 1.0, %v1607
    %v1609 = vadd.f32 %v1514, %v1594
    %v1610 = vxor.u32 %v1609, 2147483648
    %v1611 = vmul.f32 %v1610, 1.442695
    %v1612 = vpow.pop %v1611
    %v1613 = vadd.f32 %v1612, 1.0
    %v1614 = vrcp.pop %v1613
    %v1615 = vmul.f32 1.0, %v1614
    %v1616 = vadd.f32 %v1599, %v63
    %v1617 = vmul.f32 %v1608, %v1616
    %v1618 = vadd.f32 %v1519, %v1617
    %v1619 = vtanh.pop %v1618
    %v1620 = vsub.f32 1.0, %v1615
    %v1621 = vmul.f32 %v1620, %v1619
    %v1622 = vmul.f32 %v1615, %v1432
    %v1623 = vadd.f32 %v1621, %v1622
    %v1624 = vld [vmem:[%s3] sm:$0xff]
    %v1625 = vld [vmem:[%s3 + $0x8] sm:$0xff]
    %v1627 = vsel %vm175, %v1624, 0
    %v1630 = vsel %vm175, %v1625, 0
    %1632 = vmatprep.subr.mxu0 0.0
    %1633 = vmatpush1.msra.mxu0 0.0
    %1634 = vmatprep.subr.mxu0 0.0
    %1635 = vmatpush1.msra.mxu0 0.0
    %1636 = vmatprep.subr.mxu0 0.0
    %1637 = vmatpush1.msra.mxu0 0.0
    %1638 = vmatprep.subr.mxu0 0.0
    %1639 = vmatpush1.msra.mxu0 0.0
    %1640 = vmatprep.subr.mxu0 0.0
    %1641 = vmatpush1.msra.mxu0 0.0
    %1642 = vmatprep.subr.mxu0 0.0
    %1643 = vmatpush1.msra.mxu0 0.0
    %1644 = vmatprep.subr.mxu0 0.0
    %1645 = vmatpush1.msra.mxu0 0.0
    %1646 = vmatprep.subr.mxu0 0.0
    %1647 = vmatpush1.msra.mxu0 0.0
    %1648 = vmatprep.subr.mxu0 0.0
    %1649 = vmatpush1.msra.mxu0 0.0
    %1650 = vmatprep.subr.mxu0 0.0
    %1651 = vmatpush1.msra.mxu0 0.0
    %1652 = vmatprep.subr.mxu0 0.0
    %1653 = vmatpush1.msra.mxu0 0.0
    %1654 = vmatprep.subr.mxu0 0.0
    %1655 = vmatpush1.msra.mxu0 0.0
    %1656 = vmatprep.subr.mxu0 0.0
    %1657 = vmatpush1.msra.mxu0 0.0
    %1658 = vmatprep.subr.mxu0 0.0
    %1659 = vmatpush1.msra.mxu0 0.0
    %1660 = vmatprep.subr.mxu0 0.0
    %1661 = vmatpush1.msra.mxu0 0.0
    %1662 = vmatprep.subr.mxu0 0.0
    %1663 = vmatpush1.msra.mxu0 %v1623
    %1664 = vmatprep.subr.mxu0 0.0
    %1665 = vmatpush2.msra.mxu0 0.0
    %1666 = vmatprep.subr.mxu0 0.0
    %1667 = vmatpush2.msra.mxu0 0.0
    %1668 = vmatprep.subr.mxu0 0.0
    %1669 = vmatpush2.msra.mxu0 0.0
    %1670 = vmatprep.subr.mxu0 0.0
    %1671 = vmatpush2.msra.mxu0 0.0
    %1672 = vmatprep.subr.mxu0 0.0
    %1673 = vmatpush2.msra.mxu0 0.0
    %1674 = vmatprep.subr.mxu0 0.0
    %1675 = vmatpush2.msra.mxu0 0.0
    %1676 = vmatprep.subr.mxu0 0.0
    %1677 = vmatpush2.msra.mxu0 0.0
    %1678 = vmatprep.subr.mxu0 0.0
    %1679 = vmatpush2.msra.mxu0 0.0
    %1680 = vmatprep.subr.mxu0 0.0
    %1681 = vmatpush2.msra.mxu0 0.0
    %1682 = vmatprep.subr.mxu0 0.0
    %1683 = vmatpush2.msra.mxu0 0.0
    %1684 = vmatprep.subr.mxu0 0.0
    %1685 = vmatpush2.msra.mxu0 0.0
    %1686 = vmatprep.subr.mxu0 0.0
    %1687 = vmatpush2.msra.mxu0 0.0
    %1688 = vmatprep.subr.mxu0 0.0
    %1689 = vmatpush2.msra.mxu0 0.0
    %1690 = vmatprep.subr.mxu0 0.0
    %1691 = vmatpush2.msra.mxu0 0.0
    %1692 = vmatprep.subr.mxu0 0.0
    %1693 = vmatpush2.msra.mxu0 0.0
    %1694 = vmatprep.subr.mxu0 0.0
    %1695 = vmatpush2.msra.mxu0 0.0
    %1696 = vmatprep.mubr.f32.mxu0 0.0
    %1697 = vmatmul.mubr.f32.gmra.mxu0 %v1627
    %v1698 = vpop.f32.mrf.mxu0
    %v1699 = vadd.f32 %v70, %v1698
    %v1700 = vpop.f32.mrf.mxu0
    %1701 = vmatprep.mubr.f32.mxu0 0.0
    %1702 = vmatmul.mubr.f32.gmra.mxu0 %v1630
    %v1703 = vpop.f32.mrf.mxu0
    %v1704 = vadd.f32 %v75, %v1703
    %v1705 = vpop.f32.mrf.mxu0
    %1706 = vdwg.mxu0
    %1707 = vst [vmem:[#allocation5] sm:$0xff] %v1699
    %1708 = vst [vmem:[#allocation5 + $0x8] sm:$0xff] %v1704
    // Predicated region
    $region26: #{tpu_custom_call.1} parent=1 // pred_check
      _
    $region27: #{tpu_custom_call.1} parent=1 // pred_check_branch
      %1710 = sbr.rel (0) target = $region29
    $region28: #{tpu_custom_call.1} parent=1 // pred_region
      %s1712 = ssub.s32 256, 256
      %1713 = vsyncadd [#allocation4], %s1712
      %s1714 = sshll.u32 [#allocation5], 4
      %s1715 = int_to_ptr.vmem [resolvable:$true] %s1714
      %1720 = dma.vmem_to_hbm [thread:$0]  %s1715, 256, %s5, [#allocation4], 128, 128, 8
    $region29: #{tpu_custom_call.1} parent=1 // pred_fallthru
      _
    // Predicated region
    $region30: #{tpu_custom_call.1} parent=1 // pred_check
      _
    $region31: #{tpu_custom_call.1} parent=1 // pred_check_branch
      %1722 = sbr.rel (0) target = $region33
    $region32: #{tpu_custom_call.1} parent=1 // pred_region
      %1723 = dma.done [#allocation4], 256
    $region33: #{tpu_custom_call.1} parent=1 // pred_fallthru
      _
    %1724 = vsyncpa [#allocation3], 1
    %1725 = vsyncpa [#allocation4], 1

</llo_original>
